<compile_context>
chip_gen: v6e
topology: v6e:2x2x1
jax: 0.10.0
libtpu: 0.0.40
codegen_flags: <defaults>
</compile_context>

<pallas_src>
import functools
import math

import jax
import jax.numpy as jnp
from jax.experimental import pallas as pl
from jax.experimental.pallas import tpu as pltpu


def _vq_attn_kernel(
    # ---- inputs ----
    x_ref,      # (Bt, T, D)   input rows for this batch tile
    wblk_ref,   # (1, D, dv)   zero-padded per-head grouped-conv weight (block-diag slice)
    gnw_ref,    # (1, 1, dv)   GroupNorm gamma for this head
    gnb_ref,    # (1, 1, dv)   GroupNorm beta  for this head
    emb_ref,    # (V, dv)      codebook (combine_groups=True)
    wq_ref,     # (dv, dv)     proj_q weight (in, out)
    bq_ref,     # (1, dv)
    wk_ref,     # (dv, dv)     proj_k weight (in, out)
    bk_ref,     # (1, dv)
    wv_ref,     # (D, Dh)      proj_v weight (in, out)
    bv_ref,     # (1, Dh)
    temp_ref,   # (1, 1)       learnable temperature
    # ---- outputs ----
    out_ref,    # (1, Bt, T, Dh)
    attn_ref,   # (1, Bt, T, V)
    tgt_ref,    # (1, Bt, T, 1) int32
    sim_ref,    # (1, V, V)
    kl_ref,     # (1, 1, 1)     per-head sum((zq - ze)^2)
    ppl_ref,    # (1, 1, 1)     per-head exp(entropy(hard code usage))
    # ---- scratch (persist across the batch-tile axis) ----
    kl_sc,      # VMEM (1, 1)  f32
    cnt_sc,     # VMEM (1, V)  f32  hard one-hot counts
    *, Bt, T, D, V, dv, Dh, BT_total, norm_factor, eps, mm_dtype):
  f32 = jnp.float32
  b = pl.program_id(1)
  nb = pl.num_programs(1)
  BtT = Bt * T

  cast = lambda a: a.astype(mm_dtype)

  # -- init per-head accumulators at the first batch tile of this head --
  @pl.when(b == 0)
  def _():
    kl_sc[...] = jnp.zeros_like(kl_sc)
    cnt_sc[...] = jnp.zeros_like(cnt_sc)

  x3 = x_ref[...]                                       # (Bt, T, D)
  x2 = x3.reshape(BtT, D)
  emb = emb_ref[...]                                    # (V, dv)
  scale = jnp.exp(temp_ref[...])                        # (1, 1)

  # -- codebook-vs-codebook similarity (shared across heads; tiny -> recompute) --
  q = jnp.dot(emb, wq_ref[...], preferred_element_type=f32) + bq_ref[...]   # (V, dv)
  k = jnp.dot(emb, wk_ref[...], preferred_element_type=f32) + bk_ref[...]   # (V, dv)
  sim = jnp.einsum('vd,wd->vw', q, k, preferred_element_type=f32) * norm_factor
  sim_ref[0] = sim                                      # (V, V)

  # -- grouped 1x1 conv as a lane-dense (BtT, D) x (D, dv) matmul (MXU) --
  ze = jnp.dot(x2, wblk_ref[0], preferred_element_type=f32)                 # (BtT, dv)

  # -- Fp32GroupNorm: stats per (batch element, group) over (T, dv) --
  ze3 = ze.reshape(Bt, T, dv)
  mu = jnp.mean(ze3, axis=(1, 2), keepdims=True)
  var = jnp.mean((ze3 - mu) ** 2, axis=(1, 2), keepdims=True)
  zen = ((ze3 - mu) * jax.lax.rsqrt(var + eps)).reshape(BtT, dv)
  zen = zen * gnw_ref[0] + gnb_ref[0]                                       # (BtT, dv)

  # -- squared L2 distance via matmul identity (MXU instead of a (BtT,V,dv) VPU tensor) --
  zen_sq = jnp.sum(zen * zen, axis=-1, keepdims=True)                       # (BtT, 1)
  emb_sq = jnp.sum(emb * emb, axis=-1).reshape(1, V)                        # (1, V)
  cross = jnp.einsum('nd,vd->nv', zen, emb, preferred_element_type=f32)     # (BtT, V)
  dist2 = jnp.maximum(zen_sq + emb_sq - 2.0 * cross, 0.0)                   # clamp cancellation

  # -- nearest code (first-index argmin), quantized vector, VQ loss partials --
  iota_v = jax.lax.broadcasted_iota(jnp.int32, (BtT, V), 1)
  minv = jnp.min(dist2, axis=-1, keepdims=True)
  idx = jnp.min(jnp.where(dist2 == minv, iota_v, V), axis=-1, keepdims=True)  # (BtT, 1)
  tgt_ref[0] = idx.reshape(Bt, T, 1)
  onehot = (iota_v == idx).astype(f32)                                      # (BtT, V)
  zq = jnp.dot(onehot, emb, preferred_element_type=f32)                     # (BtT, dv)
  kl_sc[...] += jnp.sum((zq - zen) ** 2, keepdims=True)                     # (1, 1)
  cnt_sc[...] += jnp.sum(onehot, axis=0, keepdims=True)                     # (1, V)

  # -- d = -distance * exp(temp) --
  dsc = -jnp.sqrt(dist2) * scale                                            # (BtT, V)

  # softmax over the codebook axis (prob_v)
  ev = jnp.exp(dsc - jnp.max(dsc, axis=-1, keepdims=True))
  pv = ev * pl.reciprocal(jnp.sum(ev, axis=-1, keepdims=True), approx=True)

  # softmax over time (prob_t)
  # TODO(synk): padding mask (masked_fill) not implemented; mask=None path only.
  d3 = dsc.reshape(Bt, T, V)
  et = jnp.exp(d3 - jnp.max(d3, axis=1, keepdims=True))
  pt = et * pl.reciprocal(jnp.sum(et, axis=1, keepdims=True), approx=True)  # (Bt, T, V)

  # e_new[b, v, :] = sum_t prob_t[b, t, v] * x[b, t, :];  value = proj_v(e_new)
  e_new = jnp.einsum('btv,btd->bvd', cast(pt), cast(x3),
                     preferred_element_type=f32)                            # (Bt, V, D)
  value = jnp.einsum('bvd,de->bve', cast(e_new), cast(wv_ref[...]),
                     preferred_element_type=f32) + bv_ref[...]              # (Bt, V, Dh)
  # dropout p=0.0 -> identity

  # score = prob_v @ sim ; attn = softmax(score) ; out = attn @ value
  score = jnp.dot(cast(pv), cast(sim), preferred_element_type=f32)          # (BtT, V)
  es = jnp.exp(score - jnp.max(score, axis=-1, keepdims=True))
  attn = es * pl.reciprocal(jnp.sum(es, axis=-1, keepdims=True), approx=True)
  attn3 = attn.reshape(Bt, T, V)
  attn_ref[0] = attn3
  out_ref[0] = jnp.einsum('btv,bvd->btd', cast(attn3), cast(value),
                          preferred_element_type=f32)                       # (Bt, T, Dh)

  # -- finalize per-head loss / perplexity at the last batch tile --
  @pl.when(b == nb - 1)
  def _():
    kl_ref[0] = kl_sc[...]                                                  # raw SSE
    probs = cnt_sc[...] * (1.0 / BT_total)                                  # (1, V)
    ent = -jnp.sum(probs * jnp.log(probs + 1e-7), axis=-1, keepdims=True)
    ppl_ref[0] = jnp.exp(ent)


def init_params(key, d_model, num_heads, codebook_size):
  """Deterministic synthetic parameters, stored in PyTorch-equivalent layouts."""
  G = num_heads
  dv = d_model // G          # vq.var_dim
  Dh = d_model // G          # proj_v output dim
  V = codebook_size
  ks = jax.random.split(key, 8)
  f = jnp.float32
  return {
      'conv_w': 0.3 * jax.random.normal(ks[0], (d_model, dv), f),   # Conv1d weight[:,:,0]
      'gn_w': jnp.ones((d_model,), f),
      'gn_b': jnp.zeros((d_model,), f),
      'embedding': 0.01 * jax.random.normal(ks[1], (V, 1, dv), f),  # fairseq init scale
      'q_w': 0.3 * jax.random.normal(ks[2], (dv, dv), f),           # Linear weight (out, in)
      'q_b': 0.1 * jax.random.normal(ks[3], (dv,), f),
      'k_w': 0.3 * jax.random.normal(ks[4], (dv, dv), f),
      'k_b': 0.1 * jax.random.normal(ks[5], (dv,), f),
      'v_w': 0.3 * jax.random.normal(ks[6], (Dh, d_model), f),
      'v_b': 0.1 * jax.random.normal(ks[7], (Dh,), f),
      'temp': jnp.asarray(-math.log(0.07), f),
  }


def _pick_batch_tile(B, T, D, V, dv, Dh, budget_bytes=24 * 1024 * 1024):
  """Largest divisor of B whose per-step working set fits a conservative VMEM budget
  (sized so double-buffered blocks stay well under v7x's 64 MiB physical VMEM)."""
  per_b = 4 * (2 * T * D + 8 * T * V + V * D + V * Dh + 4 * T * dv) + 4096
  bt = max(1, min(B, budget_bytes // max(per_b, 1)))
  while B % bt:            # exact divisor so loss/perplexity partials stay exact
    bt -= 1
  return int(bt)


def vq_self_attention(x, params, batch_tile=None, use_bf16_matmul=False):
  B, T, D = x.shape
  dv = params['q_w'].shape[0]
  G = D // dv
  V = params['embedding'].shape[0]
  Dh = params['v_w'].shape[0]

  if batch_tile is None:
    batch_tile = _pick_batch_tile(B, T, D, V, dv, Dh)
  assert B % batch_tile == 0, (B, batch_tile)
  Bt = batch_tile
  nb = B // Bt

  # ---- plain-JAX layout glue (parameter reshapes only, no data-dependent compute) ----
  conv = params['conv_w'].reshape(G, dv, dv)              # (G, out_j, in_i)
  w_head = jnp.transpose(conv, (0, 2, 1))                 # (G, in_i, out_j)
  # zero-padded (D, dv) slice of the block-diagonal conv weight, one per head
  wblk = (jnp.zeros((G, G, dv, dv), jnp.float32)
          .at[jnp.arange(G), jnp.arange(G)].set(w_head)
          .reshape(G, D, dv))
  gnw = params['gn_w'].reshape(G, 1, dv)
  gnb = params['gn_b'].reshape(G, 1, dv)
  emb = params['embedding'][:, 0, :]                      # (V, dv)  combine_groups=True
  wq = params['q_w'].T
  bq = params['q_b'].reshape(1, dv)
  wk = params['k_w'].T
  bk = params['k_b'].reshape(1, dv)
  wv = params['v_w'].T                                    # (D, Dh)
  bv = params['v_b'].reshape(1, Dh)
  temp = params['temp'].reshape(1, 1)

  inputs = (x, wblk, gnw, gnb, emb, wq, bq, wk, bk, wv, bv, temp)

  kernel = functools.partial(
      _vq_attn_kernel, Bt=Bt, T=T, D=D, V=V, dv=dv, Dh=Dh,
      BT_total=B * T, norm_factor=1.0 / math.sqrt(dv), eps=1e-5,
      mm_dtype=jnp.bfloat16 if use_bf16_matmul else jnp.float32)

  out_shapes = (
      jax.ShapeDtypeStruct((G, B, T, Dh), jnp.float32),   # per-head context
      jax.ShapeDtypeStruct((G, B, T, V), jnp.float32),    # per-head attn
      jax.ShapeDtypeStruct((G, B, T, 1), jnp.int32),      # codebook targets
      jax.ShapeDtypeStruct((G, V, V), jnp.float32),       # similarity (per head)
      jax.ShapeDtypeStruct((G, 1, 1), jnp.float32),       # kmeans SSE partial per head
      jax.ShapeDtypeStruct((G, 1, 1), jnp.float32),       # code perplexity per head
  )

  in_specs = [
      pl.BlockSpec((Bt, T, D), lambda g, b: (b, 0, 0)),   # x (batch-tiled)
      pl.BlockSpec((1, D, dv), lambda g, b: (g, 0, 0)),   # wblk (per head)
      pl.BlockSpec((1, 1, dv), lambda g, b: (g, 0, 0)),   # gn gamma
      pl.BlockSpec((1, 1, dv), lambda g, b: (g, 0, 0)),   # gn beta
      pl.BlockSpec((V, dv), lambda g, b: (0, 0)),         # emb
      pl.BlockSpec((dv, dv), lambda g, b: (0, 0)),        # wq
      pl.BlockSpec((1, dv), lambda g, b: (0, 0)),         # bq
      pl.BlockSpec((dv, dv), lambda g, b: (0, 0)),        # wk
      pl.BlockSpec((1, dv), lambda g, b: (0, 0)),         # bk
      pl.BlockSpec((D, Dh), lambda g, b: (0, 0)),         # wv
      pl.BlockSpec((1, Dh), lambda g, b: (0, 0)),         # bv
      pl.BlockSpec((1, 1), lambda g, b: (0, 0)),          # temp
  ]
  out_specs = (
      pl.BlockSpec((1, Bt, T, Dh), lambda g, b: (g, b, 0, 0)),
      pl.BlockSpec((1, Bt, T, V), lambda g, b: (g, b, 0, 0)),
      pl.BlockSpec((1, Bt, T, 1), lambda g, b: (g, b, 0, 0)),
      pl.BlockSpec((1, V, V), lambda g, b: (g, 0, 0)),
      pl.BlockSpec((1, 1, 1), lambda g, b: (g, 0, 0)),
      pl.BlockSpec((1, 1, 1), lambda g, b: (g, 0, 0)),
  )

  out_k, attn_k, tgt_k, sim_k, kl_k, ppl_k = pl.pallas_call(
      kernel,
      out_shape=out_shapes,
      grid=(G, nb),
      in_specs=in_specs,
      out_specs=out_specs,
      scratch_shapes=[pltpu.VMEM((1, 1), jnp.float32),
                      pltpu.VMEM((1, V), jnp.float32)],
      compiler_params=pltpu.CompilerParams(
          # heads shard across v7x's 2 TensorCores; batch tiles carry accumulators
          dimension_semantics=("parallel", "arbitrary"),
          # stay well under v7x's 64 MiB physical VMEM (128 MiB on v5e/v6e)
          vmem_limit_bytes=48 * 1024 * 1024),
  )(*inputs)

  # ---- plain-JAX glue: back to PyTorch output layouts + partial reductions ----
  gamma = 0.25
  out = jnp.transpose(out_k, (1, 2, 0, 3)).reshape(B, T, D)      # (B, T, D)
  attn = jnp.transpose(attn_k, (1, 2, 0, 3))                     # (B, T, H, V)
  targets = jnp.transpose(tgt_k[..., 0], (1, 2, 0))              # (B, T, H) int32
  # kmeans_loss = mse(zq, ze) + gamma * mse(ze, zq) = (1 + gamma) * mean((zq - ze)^2)
  kmeans_loss = jnp.sum(kl_k) * ((1.0 + gamma) / (B * T * D))
  code_ppl = jnp.sum(ppl_k)
  return {
      'out': out,
      'attn': attn,
      'kmeans_loss': kmeans_loss,
      'code_perplexity': code_ppl,
      'targets': targets,
      'similarity': sim_k,                                       # (H, V, V)
  }


if __name__ == "__main__":
  B, T, D = 2, 8, 32        # batch, seq, d_model
  H, V = 8, 64              # num_heads, codebook_size

  key = jax.random.PRNGKey(0)
  kx, kp = jax.random.split(key)
  x = jax.random.normal(kx, (B, T, D), jnp.float32)
  params = init_params(kp, D, H, V)

  # batch_tile=1 exercises the multi-tile accumulation path (grid = (H, B)).
  res = jax.jit(functools.partial(vq_self_attention, batch_tile=1))(x, params)
  jax.block_until_ready(res)

  assert res['out'].shape == (B, T, D)
  assert res['attn'].shape == (B, T, H, V)
  assert res['targets'].shape == (B, T, H)
  assert res['similarity'].shape == (H, V, V)

  # self-consistency: whole-batch block vs. batch-tiled accumulation path
  res_full = jax.jit(functools.partial(vq_self_attention, batch_tile=B))(x, params)
  jax.block_until_ready(res_full)
  assert jnp.allclose(res['out'], res_full['out'], rtol=1e-5, atol=1e-5)
  assert jnp.allclose(res['kmeans_loss'], res_full['kmeans_loss'], rtol=1e-5, atol=1e-5)
  assert jnp.allclose(res['code_perplexity'], res_full['code_perplexity'], rtol=1e-5, atol=1e-5)

  print("KERNEL_OK")
</pallas_src>

<mosaic_0001>
module attributes {stable_mosaic.version = 11 : i64} {
  func.func @_vq_attn_kernel(%arg0: i32, %arg1: i32, %arg2: memref<1x8x32xf32, #tpu.memory_space<vmem>>, %arg3: memref<1x32x4xf32, #tpu.memory_space<vmem>>, %arg4: memref<1x1x4xf32, #tpu.memory_space<vmem>>, %arg5: memref<1x1x4xf32, #tpu.memory_space<vmem>>, %arg6: memref<64x4xf32, #tpu.memory_space<vmem>>, %arg7: memref<4x4xf32, #tpu.memory_space<vmem>>, %arg8: memref<1x4xf32, #tpu.memory_space<vmem>>, %arg9: memref<4x4xf32, #tpu.memory_space<vmem>>, %arg10: memref<1x4xf32, #tpu.memory_space<vmem>>, %arg11: memref<32x4xf32, #tpu.memory_space<vmem>>, %arg12: memref<1x4xf32, #tpu.memory_space<vmem>>, %arg13: memref<1x1xf32, #tpu.memory_space<vmem>>, %arg14: memref<1x1x8x4xf32, #tpu.memory_space<vmem>>, %arg15: memref<1x1x8x64xf32, #tpu.memory_space<vmem>>, %arg16: memref<1x1x8x1xi32, #tpu.memory_space<vmem>>, %arg17: memref<1x64x64xf32, #tpu.memory_space<vmem>>, %arg18: memref<1x1x1xf32, #tpu.memory_space<vmem>>, %arg19: memref<1x1x1xf32, #tpu.memory_space<vmem>>, %arg20: memref<1x1xf32, #tpu.memory_space<vmem>>, %arg21: memref<1x64xf32, #tpu.memory_space<vmem>>) attributes {dimension_semantics = [#tpu.dimension_semantics<parallel>, #tpu.dimension_semantics<arbitrary>], iteration_bounds = array<i64: 8, 2>, scalar_prefetch = 0 : i64, scratch_operands = 2 : i64, tpu.core_type = #tpu.core_type<tc>, window_params = [{transform_indices = @transform_0, window_bounds = array<i64: 1, 8, 32>}, {transform_indices = @transform_1, window_bounds = array<i64: 1, 32, 4>}, {transform_indices = @transform_2, window_bounds = array<i64: 1, 1, 4>}, {transform_indices = @transform_3, window_bounds = array<i64: 1, 1, 4>}, {pipeline_mode = #tpu.pipeline_mode<synchronous>, transform_indices = @transform_4, window_bounds = array<i64: 64, 4>}, {pipeline_mode = #tpu.pipeline_mode<synchronous>, transform_indices = @transform_5, window_bounds = array<i64: 4, 4>}, {pipeline_mode = #tpu.pipeline_mode<synchronous>, transform_indices = @transform_6, window_bounds = array<i64: 1, 4>}, {pipeline_mode = #tpu.pipeline_mode<synchronous>, transform_indices = @transform_7, window_bounds = array<i64: 4, 4>}, {pipeline_mode = #tpu.pipeline_mode<synchronous>, transform_indices = @transform_8, window_bounds = array<i64: 1, 4>}, {pipeline_mode = #tpu.pipeline_mode<synchronous>, transform_indices = @transform_9, window_bounds = array<i64: 32, 4>}, {pipeline_mode = #tpu.pipeline_mode<synchronous>, transform_indices = @transform_10, window_bounds = array<i64: 1, 4>}, {pipeline_mode = #tpu.pipeline_mode<synchronous>, transform_indices = @transform_11, window_bounds = array<i64: 1, 1>}, {transform_indices = @transform_12, window_bounds = array<i64: 1, 1, 8, 4>}, {transform_indices = @transform_13, window_bounds = array<i64: 1, 1, 8, 64>}, {transform_indices = @transform_14, window_bounds = array<i64: 1, 1, 8, 1>}, {transform_indices = @transform_15, window_bounds = array<i64: 1, 64, 64>}, {transform_indices = @transform_16, window_bounds = array<i64: 1, 1, 1>}, {transform_indices = @transform_17, window_bounds = array<i64: 1, 1, 1>}]} {
    %c0_i32 = arith.constant 0 : i32
    %0 = arith.cmpi eq, %arg1, %c0_i32 : i32
    %1 = arith.extui %0 : i1 to i32
    %c0_i32_0 = arith.constant 0 : i32
    %2 = arith.cmpi ne, %1, %c0_i32_0 : i32
    scf.if %2 {
      %cst_82 = arith.constant 0.000000e+00 : f32
      %158 = vector.broadcast %cst_82 : f32 to vector<1x1xf32>
      %c0_83 = arith.constant 0 : index
      %c0_84 = arith.constant 0 : index
      %159 = vector.load %arg20[%c0_83, %c0_84] : memref<1x1xf32, #tpu.memory_space<vmem>>, vector<1x1xf32>
      tpu.vector_store %arg20[%c0_83, %c0_84], %158 {strides = array<i32>} : memref<1x1xf32, #tpu.memory_space<vmem>>, vector<1x1xf32>,
      %cst_85 = arith.constant 0.000000e+00 : f32
      %160 = vector.broadcast %cst_85 : f32 to vector<1x64xf32>
      %c0_86 = arith.constant 0 : index
      %c0_87 = arith.constant 0 : index
      %161 = vector.load %arg21[%c0_86, %c0_87] : memref<1x64xf32, #tpu.memory_space<vmem>>, vector<1x64xf32>
      tpu.vector_store %arg21[%c0_86, %c0_87], %160 {strides = array<i32>} : memref<1x64xf32, #tpu.memory_space<vmem>>, vector<1x64xf32>,
    } else {
    }
    %c0 = arith.constant 0 : index
    %c0_1 = arith.constant 0 : index
    %c0_2 = arith.constant 0 : index
    %3 = vector.load %arg2[%c0, %c0_1, %c0_2] : memref<1x8x32xf32, #tpu.memory_space<vmem>>, vector<1x8x32xf32>
    %4 = vector.shape_cast %3 : vector<1x8x32xf32> to vector<8x32xf32>
    %c0_3 = arith.constant 0 : index
    %c0_4 = arith.constant 0 : index
    %5 = vector.load %arg6[%c0_3, %c0_4] : memref<64x4xf32, #tpu.memory_space<vmem>>, vector<64x4xf32>
    %c0_5 = arith.constant 0 : index
    %c0_6 = arith.constant 0 : index
    %6 = vector.load %arg13[%c0_5, %c0_6] : memref<1x1xf32, #tpu.memory_space<vmem>>, vector<1x1xf32>
    %7 = math.exp %6 : vector<1x1xf32>
    %c0_7 = arith.constant 0 : index
    %c0_8 = arith.constant 0 : index
    %8 = vector.load %arg7[%c0_7, %c0_8] : memref<4x4xf32, #tpu.memory_space<vmem>>, vector<4x4xf32>
    %cst = arith.constant dense<0.000000e+00> : vector<64x4xf32>
    %9 = tpu.matmul %5, %8, %cst {dimension_numbers = #tpu.dot_dimension_numbers<[1], [0], [0], [1], [0, 0, 1, 1], [], []>} : vector<64x4xf32>, vector<4x4xf32>, vector<64x4xf32> -> vector<64x4xf32>
    %c0_9 = arith.constant 0 : index
    %c0_10 = arith.constant 0 : index
    %10 = vector.load %arg8[%c0_9, %c0_10] : memref<1x4xf32, #tpu.memory_space<vmem>>, vector<1x4xf32>
    %11 = vector.broadcast %10 : vector<1x4xf32> to vector<64x4xf32>
    %12 = arith.addf %9, %11 : vector<64x4xf32>
    %c0_11 = arith.constant 0 : index
    %c0_12 = arith.constant 0 : index
    %13 = vector.load %arg9[%c0_11, %c0_12] : memref<4x4xf32, #tpu.memory_space<vmem>>, vector<4x4xf32>
    %cst_13 = arith.constant dense<0.000000e+00> : vector<64x4xf32>
    %14 = tpu.matmul %5, %13, %cst_13 {dimension_numbers = #tpu.dot_dimension_numbers<[1], [0], [0], [1], [0, 0, 1, 1], [], []>} : vector<64x4xf32>, vector<4x4xf32>, vector<64x4xf32> -> vector<64x4xf32>
    %c0_14 = arith.constant 0 : index
    %c0_15 = arith.constant 0 : index
    %15 = vector.load %arg10[%c0_14, %c0_15] : memref<1x4xf32, #tpu.memory_space<vmem>>, vector<1x4xf32>
    %16 = vector.broadcast %15 : vector<1x4xf32> to vector<64x4xf32>
    %17 = arith.addf %14, %16 : vector<64x4xf32>
    "tpu.trace_start"() <{level = 10 : i32, message = "vd,wd->vw"}> : () -> ()
    %cst_16 = arith.constant dense<0.000000e+00> : vector<64x64xf32>
    %18 = tpu.matmul %12, %17, %cst_16 {dimension_numbers = #tpu.dot_dimension_numbers<[1], [1], [0], [0], [0, 0, 1, 0], [], []>} : vector<64x4xf32>, vector<64x4xf32>, vector<64x64xf32> -> vector<64x64xf32>
    "tpu.trace_stop"() : () -> ()
    %cst_17 = arith.constant 5.000000e-01 : f32
    %19 = vector.broadcast %cst_17 : f32 to vector<64x64xf32>
    %20 = arith.mulf %18, %19 : vector<64x64xf32>
    %c0_18 = arith.constant 0 : index
    %c0_19 = arith.constant 0 : index
    %c0_20 = arith.constant 0 : index
    %21 = vector.load %arg17[%c0_18, %c0_19, %c0_20] : memref<1x64x64xf32, #tpu.memory_space<vmem>>, vector<1x64x64xf32>
    %22 = vector.shape_cast %21 : vector<1x64x64xf32> to vector<64x64xf32>
    %23 = vector.shape_cast %20 : vector<64x64xf32> to vector<1x64x64xf32>
    tpu.vector_store %arg17[%c0_18, %c0_19, %c0_20], %23 {strides = array<i32>} : memref<1x64x64xf32, #tpu.memory_space<vmem>>, vector<1x64x64xf32>,
    %c0_21 = arith.constant 0 : index
    %c0_22 = arith.constant 0 : index
    %c0_23 = arith.constant 0 : index
    %24 = vector.load %arg3[%c0_21, %c0_22, %c0_23] : memref<1x32x4xf32, #tpu.memory_space<vmem>>, vector<1x32x4xf32>
    %25 = vector.shape_cast %24 : vector<1x32x4xf32> to vector<32x4xf32>
    %cst_24 = arith.constant dense<0.000000e+00> : vector<8x4xf32>
    %26 = tpu.matmul %4, %25, %cst_24 {dimension_numbers = #tpu.dot_dimension_numbers<[1], [0], [0], [1], [0, 0, 1, 1], [], []>} : vector<8x32xf32>, vector<32x4xf32>, vector<8x4xf32> -> vector<8x4xf32>
    %27 = vector.shape_cast %26 : vector<8x4xf32> to vector<1x8x4xf32>
    %cst_25 = arith.constant dense<0.000000e+00> : vector<1xf32>
    %28 = vector.multi_reduction <add>, %27, %cst_25 [1, 2] : vector<1x8x4xf32> to vector<1xf32>
    %29 = vector.shape_cast %28 : vector<1xf32> to vector<1x1x1xf32>
    %cst_26 = arith.constant 3.200000e+01 : f32
    %30 = vector.broadcast %cst_26 : f32 to vector<1x1x1xf32>
    %31 = arith.divf %29, %30 : vector<1x1x1xf32>
    %32 = vector.broadcast %31 : vector<1x1x1xf32> to vector<1x8x4xf32>
    %33 = arith.subf %27, %32 : vector<1x8x4xf32>
    %34 = arith.mulf %33, %33 : vector<1x8x4xf32>
    %cst_27 = arith.constant dense<0.000000e+00> : vector<1xf32>
    %35 = vector.multi_reduction <add>, %34, %cst_27 [1, 2] : vector<1x8x4xf32> to vector<1xf32>
    %36 = vector.shape_cast %35 : vector<1xf32> to vector<1x1x1xf32>
    %cst_28 = arith.constant 3.200000e+01 : f32
    %37 = vector.broadcast %cst_28 : f32 to vector<1x1x1xf32>
    %38 = arith.divf %36, %37 : vector<1x1x1xf32>
    %39 = vector.broadcast %31 : vector<1x1x1xf32> to vector<1x8x4xf32>
    %40 = arith.subf %27, %39 : vector<1x8x4xf32>
    %cst_29 = arith.constant 9.99999974E-6 : f32
    %41 = vector.broadcast %cst_29 : f32 to vector<1x1x1xf32>
    %42 = arith.addf %38, %41 : vector<1x1x1xf32>
    %43 = math.rsqrt %42 : vector<1x1x1xf32>
    %44 = vector.broadcast %43 : vector<1x1x1xf32> to vector<1x8x4xf32>
    %45 = arith.mulf %40, %44 : vector<1x8x4xf32>
    %46 = vector.shape_cast %45 : vector<1x8x4xf32> to vector<8x4xf32>
    %c0_30 = arith.constant 0 : index
    %c0_31 = arith.constant 0 : index
    %c0_32 = arith.constant 0 : index
    %47 = vector.load %arg4[%c0_30, %c0_31, %c0_32] : memref<1x1x4xf32, #tpu.memory_space<vmem>>, vector<1x1x4xf32>
    %48 = vector.shape_cast %47 : vector<1x1x4xf32> to vector<1x4xf32>
    %49 = vector.broadcast %48 : vector<1x4xf32> to vector<8x4xf32>
    %50 = arith.mulf %46, %49 : vector<8x4xf32>
    %c0_33 = arith.constant 0 : index
    %c0_34 = arith.constant 0 : index
    %c0_35 = arith.constant 0 : index
    %51 = vector.load %arg5[%c0_33, %c0_34, %c0_35] : memref<1x1x4xf32, #tpu.memory_space<vmem>>, vector<1x1x4xf32>
    %52 = vector.shape_cast %51 : vector<1x1x4xf32> to vector<1x4xf32>
    %53 = vector.broadcast %52 : vector<1x4xf32> to vector<8x4xf32>
    %54 = arith.addf %50, %53 : vector<8x4xf32>
    %55 = arith.mulf %54, %54 : vector<8x4xf32>
    %cst_36 = arith.constant dense<0.000000e+00> : vector<8xf32>
    %56 = vector.multi_reduction <add>, %55, %cst_36 [1] : vector<8x4xf32> to vector<8xf32>
    %57 = vector.shape_cast %56 : vector<8xf32> to vector<8x1xf32>
    %58 = arith.mulf %5, %5 : vector<64x4xf32>
    %cst_37 = arith.constant dense<0.000000e+00> : vector<64xf32>
    %59 = vector.multi_reduction <add>, %58, %cst_37 [1] : vector<64x4xf32> to vector<64xf32>
    %60 = vector.shape_cast %59 : vector<64xf32> to vector<1x64xf32>
    "tpu.trace_start"() <{level = 10 : i32, message = "nd,vd->nv"}> : () -> ()
    %cst_38 = arith.constant dense<0.000000e+00> : vector<8x64xf32>
    %61 = tpu.matmul %54, %5, %cst_38 {dimension_numbers = #tpu.dot_dimension_numbers<[1], [1], [0], [0], [0, 0, 1, 0], [], []>} : vector<8x4xf32>, vector<64x4xf32>, vector<8x64xf32> -> vector<8x64xf32>
    "tpu.trace_stop"() : () -> ()
    %62 = vector.broadcast %57 : vector<8x1xf32> to vector<8x64xf32>
    %63 = vector.broadcast %60 : vector<1x64xf32> to vector<8x64xf32>
    %64 = arith.addf %62, %63 : vector<8x64xf32>
    %cst_39 = arith.constant 2.000000e+00 : f32
    %65 = vector.broadcast %cst_39 : f32 to vector<8x64xf32>
    %66 = arith.mulf %65, %61 : vector<8x64xf32>
    %67 = arith.subf %64, %66 : vector<8x64xf32>
    %cst_40 = arith.constant 0.000000e+00 : f32
    %68 = vector.broadcast %cst_40 : f32 to vector<8x64xf32>
    %69 = arith.maximumf %67, %68 : vector<8x64xf32>
    %70 = tpu.iota {dimensions = array<i32: 1>} : vector<8x64xi32>
    %cst_41 = arith.constant dense<0x7F800000> : vector<8xf32>
    %71 = vector.multi_reduction <minimumf>, %69, %cst_41 [1] : vector<8x64xf32> to vector<8xf32>
    %72 = vector.shape_cast %71 : vector<8xf32> to vector<8x1xf32>
    %73 = vector.broadcast %72 : vector<8x1xf32> to vector<8x64xf32>
    %74 = arith.cmpf oeq, %69, %73 : vector<8x64xf32>
    %c64_i32 = arith.constant 64 : i32
    %75 = vector.broadcast %c64_i32 : i32 to vector<8x64xi32>
    %76 = arith.select %74, %70, %75 : vector<8x64xi1>, vector<8x64xi32>
    %cst_42 = arith.constant dense<2147483647> : vector<8xi32>
    %77 = vector.multi_reduction <minsi>, %76, %cst_42 [1] : vector<8x64xi32> to vector<8xi32>
    %78 = vector.shape_cast %77 : vector<8xi32> to vector<8x1xi32>
    %79 = vector.shape_cast %78 : vector<8x1xi32> to vector<1x8x1xi32>
    %c0_43 = arith.constant 0 : index
    %c0_44 = arith.constant 0 : index
    %c0_45 = arith.constant 0 : index
    %c0_46 = arith.constant 0 : index
    %80 = vector.load %arg16[%c0_43, %c0_44, %c0_45, %c0_46] : memref<1x1x8x1xi32, #tpu.memory_space<vmem>>, vector<1x1x8x1xi32>
    %81 = vector.shape_cast %80 : vector<1x1x8x1xi32> to vector<1x8x1xi32>
    %82 = vector.shape_cast %79 : vector<1x8x1xi32> to vector<1x1x8x1xi32>
    tpu.vector_store %arg16[%c0_43, %c0_44, %c0_45, %c0_46], %82 {strides = array<i32>} : memref<1x1x8x1xi32, #tpu.memory_space<vmem>>, vector<1x1x8x1xi32>,
    %83 = vector.broadcast %78 : vector<8x1xi32> to vector<8x64xi32>
    %84 = arith.cmpi eq, %70, %83 : vector<8x64xi32>
    %85 = arith.extui %84 : vector<8x64xi1> to vector<8x64xi32>
    %86 = arith.sitofp %85 : vector<8x64xi32> to vector<8x64xf32>
    %cst_47 = arith.constant dense<0.000000e+00> : vector<8x4xf32>
    %87 = tpu.matmul %86, %5, %cst_47 {dimension_numbers = #tpu.dot_dimension_numbers<[1], [0], [0], [1], [0, 0, 1, 1], [], []>} : vector<8x64xf32>, vector<64x4xf32>, vector<8x4xf32> -> vector<8x4xf32>
    %c0_48 = arith.constant 0 : index
    %c0_49 = arith.constant 0 : index
    %88 = vector.load %arg20[%c0_48, %c0_49] : memref<1x1xf32, #tpu.memory_space<vmem>>, vector<1x1xf32>
    %89 = arith.subf %87, %54 : vector<8x4xf32>
    %90 = arith.mulf %89, %89 : vector<8x4xf32>
    %91 = vector.shape_cast %90 : vector<8x4xf32> to vector<1x8x4xf32>
    %cst_50 = arith.constant dense<0.000000e+00> : vector<1xf32>
    %92 = vector.multi_reduction <add>, %91, %cst_50 [1, 2] : vector<1x8x4xf32> to vector<1xf32>
    %93 = vector.shape_cast %92 : vector<1xf32> to vector<1x1x1xf32>
    %94 = vector.extract %93[0, 0, 0] : f32 from vector<1x1x1xf32>
    %95 = vector.broadcast %94 : f32 to vector<1x1xf32>
    %96 = arith.addf %88, %95 : vector<1x1xf32>
    %c0_51 = arith.constant 0 : index
    %c0_52 = arith.constant 0 : index
    %97 = vector.load %arg20[%c0_51, %c0_52] : memref<1x1xf32, #tpu.memory_space<vmem>>, vector<1x1xf32>
    tpu.vector_store %arg20[%c0_51, %c0_52], %96 {strides = array<i32>} : memref<1x1xf32, #tpu.memory_space<vmem>>, vector<1x1xf32>,
    %c0_53 = arith.constant 0 : index
    %c0_54 = arith.constant 0 : index
    %98 = vector.load %arg21[%c0_53, %c0_54] : memref<1x64xf32, #tpu.memory_space<vmem>>, vector<1x64xf32>
    %cst_55 = arith.constant dense<0.000000e+00> : vector<64xf32>
    %99 = vector.multi_reduction <add>, %86, %cst_55 [0] : vector<8x64xf32> to vector<64xf32>
    %100 = vector.shape_cast %99 : vector<64xf32> to vector<1x64xf32>
    %101 = arith.addf %98, %100 : vector<1x64xf32>
    %c0_56 = arith.constant 0 : index
    %c0_57 = arith.constant 0 : index
    %102 = vector.load %arg21[%c0_56, %c0_57] : memref<1x64xf32, #tpu.memory_space<vmem>>, vector<1x64xf32>
    tpu.vector_store %arg21[%c0_56, %c0_57], %101 {strides = array<i32>} : memref<1x64xf32, #tpu.memory_space<vmem>>, vector<1x64xf32>,
    %103 = math.sqrt %69 : vector<8x64xf32>
    %cst_58 = arith.constant 0.000000e+00 : f32
    %104 = vector.broadcast %cst_58 : f32 to vector<8x64xf32>
    %105 = arith.subf %104, %103 : vector<8x64xf32>
    %106 = vector.broadcast %7 : vector<1x1xf32> to vector<8x64xf32>
    %107 = arith.mulf %105, %106 : vector<8x64xf32>
    %cst_59 = arith.constant dense<0xFF800000> : vector<8xf32>
    %108 = vector.multi_reduction <maximumf>, %107, %cst_59 [1] : vector<8x64xf32> to vector<8xf32>
    %109 = vector.shape_cast %108 : vector<8xf32> to vector<8x1xf32>
    %110 = vector.broadcast %109 : vector<8x1xf32> to vector<8x64xf32>
    %111 = arith.subf %107, %110 : vector<8x64xf32>
    %112 = math.exp %111 : vector<8x64xf32>
    %cst_60 = arith.constant dense<0.000000e+00> : vector<8xf32>
    %113 = vector.multi_reduction <add>, %112, %cst_60 [1] : vector<8x64xf32> to vector<8xf32>
    %114 = vector.shape_cast %113 : vector<8xf32> to vector<8x1xf32>
    %115 = tpu.reciprocal %114 {approx = true} : vector<8x1xf32> -> vector<8x1xf32>
    %116 = vector.broadcast %115 : vector<8x1xf32> to vector<8x64xf32>
    %117 = arith.mulf %112, %116 : vector<8x64xf32>
    %118 = vector.shape_cast %107 : vector<8x64xf32> to vector<1x8x64xf32>
    %cst_61 = arith.constant dense<0xFF800000> : vector<1x64xf32>
    %119 = vector.multi_reduction <maximumf>, %118, %cst_61 [1] : vector<1x8x64xf32> to vector<1x64xf32>
    %120 = vector.shape_cast %119 : vector<1x64xf32> to vector<1x1x64xf32>
    %121 = vector.broadcast %120 : vector<1x1x64xf32> to vector<1x8x64xf32>
    %122 = arith.subf %118, %121 : vector<1x8x64xf32>
    %123 = math.exp %122 : vector<1x8x64xf32>
    %cst_62 = arith.constant dense<0.000000e+00> : vector<1x64xf32>
    %124 = vector.multi_reduction <add>, %123, %cst_62 [1] : vector<1x8x64xf32> to vector<1x64xf32>
    %125 = vector.shape_cast %124 : vector<1x64xf32> to vector<1x1x64xf32>
    %126 = tpu.reciprocal %125 {approx = true} : vector<1x1x64xf32> -> vector<1x1x64xf32>
    %127 = vector.broadcast %126 : vector<1x1x64xf32> to vector<1x8x64xf32>
    %128 = arith.mulf %123, %127 : vector<1x8x64xf32>
    "tpu.trace_start"() <{level = 10 : i32, message = "btv,btd->bvd"}> : () -> ()
    %cst_63 = arith.constant dense<0.000000e+00> : vector<1x64x32xf32>
    %129 = tpu.matmul %128, %3, %cst_63 {dimension_numbers = #tpu.dot_dimension_numbers<[1], [1], [2], [2], [0, 0, 0, 2, 1, 2], [0], [0]>} : vector<1x8x64xf32>, vector<1x8x32xf32>, vector<1x64x32xf32> -> vector<1x64x32xf32>
    "tpu.trace_stop"() : () -> ()
    %c0_64 = arith.constant 0 : index
    %c0_65 = arith.constant 0 : index
    %130 = vector.load %arg11[%c0_64, %c0_65] : memref<32x4xf32, #tpu.memory_space<vmem>>, vector<32x4xf32>
    "tpu.trace_start"() <{level = 10 : i32, message = "bvd,de->bve"}> : () -> ()
    %cst_66 = arith.constant dense<0.000000e+00> : vector<1x64x4xf32>
    %131 = tpu.matmul %129, %130, %cst_66 {dimension_numbers = #tpu.dot_dimension_numbers<[2], [0], [0, 1], [1], [0, 0, 0, 1, 1, 1], [], []>} : vector<1x64x32xf32>, vector<32x4xf32>, vector<1x64x4xf32> -> vector<1x64x4xf32>
    "tpu.trace_stop"() : () -> ()
    %c0_67 = arith.constant 0 : index
    %c0_68 = arith.constant 0 : index
    %132 = vector.load %arg12[%c0_67, %c0_68] : memref<1x4xf32, #tpu.memory_space<vmem>>, vector<1x4xf32>
    %133 = vector.shape_cast %132 : vector<1x4xf32> to vector<1x1x4xf32>
    %134 = vector.broadcast %133 : vector<1x1x4xf32> to vector<1x64x4xf32>
    %135 = arith.addf %131, %134 : vector<1x64x4xf32>
    %cst_69 = arith.constant dense<0.000000e+00> : vector<8x64xf32>
    %136 = tpu.matmul %117, %20, %cst_69 {dimension_numbers = #tpu.dot_dimension_numbers<[1], [0], [0], [1], [0, 0, 1, 1], [], []>} : vector<8x64xf32>, vector<64x64xf32>, vector<8x64xf32> -> vector<8x64xf32>
    %cst_70 = arith.constant dense<0xFF800000> : vector<8xf32>
    %137 = vector.multi_reduction <maximumf>, %136, %cst_70 [1] : vector<8x64xf32> to vector<8xf32>
    %138 = vector.shape_cast %137 : vector<8xf32> to vector<8x1xf32>
    %139 = vector.broadcast %138 : vector<8x1xf32> to vector<8x64xf32>
    %140 = arith.subf %136, %139 : vector<8x64xf32>
    %141 = math.exp %140 : vector<8x64xf32>
    %cst_71 = arith.constant dense<0.000000e+00> : vector<8xf32>
    %142 = vector.multi_reduction <add>, %141, %cst_71 [1] : vector<8x64xf32> to vector<8xf32>
    %143 = vector.shape_cast %142 : vector<8xf32> to vector<8x1xf32>
    %144 = tpu.reciprocal %143 {approx = true} : vector<8x1xf32> -> vector<8x1xf32>
    %145 = vector.broadcast %144 : vector<8x1xf32> to vector<8x64xf32>
    %146 = arith.mulf %141, %145 : vector<8x64xf32>
    %147 = vector.shape_cast %146 : vector<8x64xf32> to vector<1x8x64xf32>
    %c0_72 = arith.constant 0 : index
    %c0_73 = arith.constant 0 : index
    %c0_74 = arith.constant 0 : index
    %c0_75 = arith.constant 0 : index
    %148 = vector.load %arg15[%c0_72, %c0_73, %c0_74, %c0_75] : memref<1x1x8x64xf32, #tpu.memory_space<vmem>>, vector<1x1x8x64xf32>
    %149 = vector.shape_cast %148 : vector<1x1x8x64xf32> to vector<1x8x64xf32>
    %150 = vector.shape_cast %147 : vector<1x8x64xf32> to vector<1x1x8x64xf32>
    tpu.vector_store %arg15[%c0_72, %c0_73, %c0_74, %c0_75], %150 {strides = array<i32>} : memref<1x1x8x64xf32, #tpu.memory_space<vmem>>, vector<1x1x8x64xf32>,
    "tpu.trace_start"() <{level = 10 : i32, message = "btv,bvd->btd"}> : () -> ()
    %cst_76 = arith.constant dense<0.000000e+00> : vector<1x8x4xf32>
    %151 = tpu.matmul %147, %135, %cst_76 {dimension_numbers = #tpu.dot_dimension_numbers<[2], [1], [1], [2], [0, 0, 0, 1, 1, 2], [0], [0]>} : vector<1x8x64xf32>, vector<1x64x4xf32>, vector<1x8x4xf32> -> vector<1x8x4xf32>
    "tpu.trace_stop"() : () -> ()
    %c0_77 = arith.constant 0 : index
    %c0_78 = arith.constant 0 : index
    %c0_79 = arith.constant 0 : index
    %c0_80 = arith.constant 0 : index
    %152 = vector.load %arg14[%c0_77, %c0_78, %c0_79, %c0_80] : memref<1x1x8x4xf32, #tpu.memory_space<vmem>>, vector<1x1x8x4xf32>
    %153 = vector.shape_cast %152 : vector<1x1x8x4xf32> to vector<1x8x4xf32>
    %154 = vector.shape_cast %151 : vector<1x8x4xf32> to vector<1x1x8x4xf32>
    tpu.vector_store %arg14[%c0_77, %c0_78, %c0_79, %c0_80], %154 {strides = array<i32>} : memref<1x1x8x4xf32, #tpu.memory_space<vmem>>, vector<1x1x8x4xf32>,
    %c1_i32 = arith.constant 1 : i32
    %155 = arith.cmpi eq, %arg1, %c1_i32 : i32
    %156 = arith.extui %155 : i1 to i32
    %c0_i32_81 = arith.constant 0 : i32
    %157 = arith.cmpi ne, %156, %c0_i32_81 : i32
    scf.if %157 {
      %c0_82 = arith.constant 0 : index
      %c0_83 = arith.constant 0 : index
      %158 = vector.load %arg20[%c0_82, %c0_83] : memref<1x1xf32, #tpu.memory_space<vmem>>, vector<1x1xf32>
      %c0_84 = arith.constant 0 : index
      %c0_85 = arith.constant 0 : index
      %c0_86 = arith.constant 0 : index
      %159 = vector.load %arg18[%c0_84, %c0_85, %c0_86] : memref<1x1x1xf32, #tpu.memory_space<vmem>>, vector<1x1x1xf32>
      %160 = vector.shape_cast %159 : vector<1x1x1xf32> to vector<1x1xf32>
      %161 = vector.shape_cast %158 : vector<1x1xf32> to vector<1x1x1xf32>
      tpu.vector_store %arg18[%c0_84, %c0_85, %c0_86], %161 {strides = array<i32>} : memref<1x1x1xf32, #tpu.memory_space<vmem>>, vector<1x1x1xf32>,
      %c0_87 = arith.constant 0 : index
      %c0_88 = arith.constant 0 : index
      %162 = vector.load %arg21[%c0_87, %c0_88] : memref<1x64xf32, #tpu.memory_space<vmem>>, vector<1x64xf32>
      %cst_89 = arith.constant 6.250000e-02 : f32
      %163 = vector.broadcast %cst_89 : f32 to vector<1x64xf32>
      %164 = arith.mulf %162, %163 : vector<1x64xf32>
      %cst_90 = arith.constant 1.000000e-07 : f32
      %165 = vector.broadcast %cst_90 : f32 to vector<1x64xf32>
      %166 = arith.addf %164, %165 : vector<1x64xf32>
      %167 = math.log %166 : vector<1x64xf32>
      %168 = arith.mulf %164, %167 : vector<1x64xf32>
      %cst_91 = arith.constant dense<0.000000e+00> : vector<1xf32>
      %169 = vector.multi_reduction <add>, %168, %cst_91 [1] : vector<1x64xf32> to vector<1xf32>
      %170 = vector.shape_cast %169 : vector<1xf32> to vector<1x1xf32>
      %cst_92 = arith.constant 0.000000e+00 : f32
      %171 = vector.broadcast %cst_92 : f32 to vector<1x1xf32>
      %172 = arith.subf %171, %170 : vector<1x1xf32>
      %173 = math.exp %172 : vector<1x1xf32>
      %c0_93 = arith.constant 0 : index
      %c0_94 = arith.constant 0 : index
      %c0_95 = arith.constant 0 : index
      %174 = vector.load %arg19[%c0_93, %c0_94, %c0_95] : memref<1x1x1xf32, #tpu.memory_space<vmem>>, vector<1x1x1xf32>
      %175 = vector.shape_cast %174 : vector<1x1x1xf32> to vector<1x1xf32>
      %176 = vector.shape_cast %173 : vector<1x1xf32> to vector<1x1x1xf32>
      tpu.vector_store %arg19[%c0_93, %c0_94, %c0_95], %176 {strides = array<i32>} : memref<1x1x1xf32, #tpu.memory_space<vmem>>, vector<1x1x1xf32>,
    } else {
    }
    return
  }
  func.func @transform_0(%arg0: i32, %arg1: i32) -> (i32, i32, i32) {
    %c0_i32 = arith.constant 0 : i32
    %c0_i32_0 = arith.constant 0 : i32
    %c0_i32_1 = arith.constant 0 : i32
    return %arg1, %c0_i32, %c0_i32_0 : i32, i32, i32
  }
  func.func @transform_1(%arg0: i32, %arg1: i32) -> (i32, i32, i32) {
    %c0_i32 = arith.constant 0 : i32
    %c0_i32_0 = arith.constant 0 : i32
    %c0_i32_1 = arith.constant 0 : i32
    return %arg0, %c0_i32, %c0_i32_0 : i32, i32, i32
  }
  func.func @transform_2(%arg0: i32, %arg1: i32) -> (i32, i32, i32) {
    %c0_i32 = arith.constant 0 : i32
    %c0_i32_0 = arith.constant 0 : i32
    %c0_i32_1 = arith.constant 0 : i32
    return %arg0, %c0_i32, %c0_i32_0 : i32, i32, i32
  }
  func.func @transform_3(%arg0: i32, %arg1: i32) -> (i32, i32, i32) {
    %c0_i32 = arith.constant 0 : i32
    %c0_i32_0 = arith.constant 0 : i32
    %c0_i32_1 = arith.constant 0 : i32
    return %arg0, %c0_i32, %c0_i32_0 : i32, i32, i32
  }
  func.func @transform_4(%arg0: i32, %arg1: i32) -> (i32, i32) {
    %c0_i32 = arith.constant 0 : i32
    %c0_i32_0 = arith.constant 0 : i32
    %c0_i32_1 = arith.constant 0 : i32
    return %c0_i32, %c0_i32_0 : i32, i32
  }
  func.func @transform_5(%arg0: i32, %arg1: i32) -> (i32, i32) {
    %c0_i32 = arith.constant 0 : i32
    %c0_i32_0 = arith.constant 0 : i32
    %c0_i32_1 = arith.constant 0 : i32
    return %c0_i32, %c0_i32_0 : i32, i32
  }
  func.func @transform_6(%arg0: i32, %arg1: i32) -> (i32, i32) {
    %c0_i32 = arith.constant 0 : i32
    %c0_i32_0 = arith.constant 0 : i32
    %c0_i32_1 = arith.constant 0 : i32
    return %c0_i32, %c0_i32_0 : i32, i32
  }
  func.func @transform_7(%arg0: i32, %arg1: i32) -> (i32, i32) {
    %c0_i32 = arith.constant 0 : i32
    %c0_i32_0 = arith.constant 0 : i32
    %c0_i32_1 = arith.constant 0 : i32
    return %c0_i32, %c0_i32_0 : i32, i32
  }
  func.func @transform_8(%arg0: i32, %arg1: i32) -> (i32, i32) {
    %c0_i32 = arith.constant 0 : i32
    %c0_i32_0 = arith.constant 0 : i32
    %c0_i32_1 = arith.constant 0 : i32
    return %c0_i32, %c0_i32_0 : i32, i32
  }
  func.func @transform_9(%arg0: i32, %arg1: i32) -> (i32, i32) {
    %c0_i32 = arith.constant 0 : i32
    %c0_i32_0 = arith.constant 0 : i32
    %c0_i32_1 = arith.constant 0 : i32
    return %c0_i32, %c0_i32_0 : i32, i32
  }
  func.func @transform_10(%arg0: i32, %arg1: i32) -> (i32, i32) {
    %c0_i32 = arith.constant 0 : i32
    %c0_i32_0 = arith.constant 0 : i32
    %c0_i32_1 = arith.constant 0 : i32
    return %c0_i32, %c0_i32_0 : i32, i32
  }
  func.func @transform_11(%arg0: i32, %arg1: i32) -> (i32, i32) {
    %c0_i32 = arith.constant 0 : i32
    %c0_i32_0 = arith.constant 0 : i32
    %c0_i32_1 = arith.constant 0 : i32
    return %c0_i32, %c0_i32_0 : i32, i32
  }
  func.func @transform_12(%arg0: i32, %arg1: i32) -> (i32, i32, i32, i32) {
    %c0_i32 = arith.constant 0 : i32
    %c0_i32_0 = arith.constant 0 : i32
    %c0_i32_1 = arith.constant 0 : i32
    return %arg0, %arg1, %c0_i32, %c0_i32_0 : i32, i32, i32, i32
  }
  func.func @transform_13(%arg0: i32, %arg1: i32) -> (i32, i32, i32, i32) {
    %c0_i32 = arith.constant 0 : i32
    %c0_i32_0 = arith.constant 0 : i32
    %c0_i32_1 = arith.constant 0 : i32
    return %arg0, %arg1, %c0_i32, %c0_i32_0 : i32, i32, i32, i32
  }
  func.func @transform_14(%arg0: i32, %arg1: i32) -> (i32, i32, i32, i32) {
    %c0_i32 = arith.constant 0 : i32
    %c0_i32_0 = arith.constant 0 : i32
    %c0_i32_1 = arith.constant 0 : i32
    return %arg0, %arg1, %c0_i32, %c0_i32_0 : i32, i32, i32, i32
  }
  func.func @transform_15(%arg0: i32, %arg1: i32) -> (i32, i32, i32) {
    %c0_i32 = arith.constant 0 : i32
    %c0_i32_0 = arith.constant 0 : i32
    %c0_i32_1 = arith.constant 0 : i32
    return %arg0, %c0_i32, %c0_i32_0 : i32, i32, i32
  }
  func.func @transform_16(%arg0: i32, %arg1: i32) -> (i32, i32, i32) {
    %c0_i32 = arith.constant 0 : i32
    %c0_i32_0 = arith.constant 0 : i32
    %c0_i32_1 = arith.constant 0 : i32
    return %arg0, %c0_i32, %c0_i32_0 : i32, i32, i32
  }
  func.func @transform_17(%arg0: i32, %arg1: i32) -> (i32, i32, i32) {
    %c0_i32 = arith.constant 0 : i32
    %c0_i32_0 = arith.constant 0 : i32
    %c0_i32_1 = arith.constant 0 : i32
    return %arg0, %c0_i32, %c0_i32_0 : i32, i32, i32
  }
}

</mosaic_0001>

<llo_original>
// kernel: vq_self_attention.1
$region0: #{vq_self_attention.1}
  #allocation0 [shape = 'u32[]', space=smem, size = 0x4, offset = 0x4, fixed_abs, tag = 'smem constant byte address 0x4 - core index']
  #allocation1 [shape = 'u32[144,128]{1,0:T(1,128)}', space=vmem, size = 0x12000, scoped, tag = 'internal scratch']
  #allocation2 [shape = 'f32[1,1]{1,0:T(1,128)}', space=vmem, size = 0x200, scoped, tag = 'scratch operand']
  #allocation3 [shape = 'f32[1,64]{1,0:T(1,128)}', space=vmem, size = 0x200, scoped, tag = 'scratch operand']
  #allocation4 [shape = 'f32[1,1]{1,0:T(1,128)S(1)}', space=vmem, size = 0x200, scoped, tag = 'scoped memory for vq_self_attention.1']
  %s0 = inlined_call_operand.vmem [shape: f32[2,8,32], index: 0, kind: input, shape index: {}]
  %s1 = inlined_call_operand.vmem [shape: f32[8,32,4], index: 1, kind: input, shape index: {}]
  %s2 = inlined_call_operand.vmem [shape: f32[8,1,4], index: 2, kind: input, shape index: {}]
  %s3 = inlined_call_operand.vmem [shape: f32[8,1,4], index: 3, kind: input, shape index: {}]
  %s4 = inlined_call_operand.vmem [shape: f32[64,4], index: 4, kind: input, shape index: {}]
  %s5 = inlined_call_operand.vmem [shape: f32[4,4], index: 5, kind: input, shape index: {}]
  %s6 = inlined_call_operand.vmem [shape: f32[1,4], index: 6, kind: input, shape index: {}]
  %s7 = inlined_call_operand.vmem [shape: f32[4,4], index: 7, kind: input, shape index: {}]
  %s8 = inlined_call_operand.vmem [shape: f32[1,4], index: 8, kind: input, shape index: {}]
  %s9 = inlined_call_operand.vmem [shape: f32[32,4], index: 9, kind: input, shape index: {}]
  %s10 = inlined_call_operand.vmem [shape: f32[1,4], index: 10, kind: input, shape index: {}]
  %s11 = inlined_call_operand.<no memory space> [shape: f32[1,1], index: 11, kind: input, shape index: {}]
  %s12 = inlined_call_operand.vmem [shape: f32[8,2,8,4], index: 12, kind: output, shape index: {0}]
  %s13 = inlined_call_operand.vmem [shape: f32[8,2,8,64], index: 13, kind: output, shape index: {1}]
  %s14 = inlined_call_operand.vmem [shape: s32[8,2,8,1], index: 14, kind: output, shape index: {2}]
  %s15 = inlined_call_operand.hbm [shape: f32[8,64,64], index: 15, kind: output, shape index: {3}]
  %s16 = inlined_call_operand.vmem [shape: f32[8,1,1], index: 16, kind: output, shape index: {4}]
  %s17 = inlined_call_operand.vmem [shape: f32[8,1,1], index: 17, kind: output, shape index: {5}]
  %18 = xla_tuple %s12, %s13, %s14, %s15, %s16, %s17
  %s19 = sld [smem:[#allocation0]]
  $region129: #{vq_self_attention.1} parent=0
    _
  %s21 = ssub.s32 1, %s19
  %s22 = scalar_select 0, %s21, %s19
  %v23 = vstv %s11
  %24 = vst [vmem:[#allocation4] sm:$0x1] %v23
  $region1: #{vq_self_attention.1} parent=0
    #allocation5 [shape = 'u8[65536]{0}', space=vmem, size = 0x10000, scoped, tag = 'output window, operand 3']
    #allocation6 [shape = 's32[2]{0}', space=sflag, size = 0x8, scoped, tag = 'scoped memory for vq_self_attention.1']
    %25 = vsyncpa [#allocation6], 0
    %s26 = scalar_lea.sflag [#allocation6], 1
    %27 = vsyncpa %s26, 0
    loop: start=0, step=1, limit=18
    $region2: #{vq_self_attention.1} parent=1 // loop_pre_header
      _
    $region3: #{vq_self_attention.1} parent=1 // loop_header
      %s29 = sphi 0, %s33
      %p30 = scmp.ge.s32.totalorder %s29, 18
      %s36 = sphi 0, %s48
      %s37 = sphi 0, %s44
      %s38 = sphi 0, %s36
      %s39 = sphi 0, %s37
      %s40 = sphi 0, %s38
      %s41 = sphi 0, %s39
      %s51 = sphi 0, %s53
      %s54 = sphi 0, %s51
      %s55 = sphi 0, %s54
      %s71 = sphi 0, %s55
      %s77 = sphi 0, %s79
      %s80 = sphi 0, %s77
      %s81 = sphi 0, %s80
      %s97 = sphi 0, %s81
      %s103 = sphi 0, %s105
      %s106 = sphi 0, %s103
      %s107 = sphi 0, %s106
      %s123 = sphi 0, %s107
      %s129 = sphi 0, %s131
      %s132 = sphi 0, %s129
      %s133 = sphi 0, %s132
      %s149 = sphi 0, %s133
      %s153 = sphi 0, %s153
      %s155 = sphi 0, %s153
      %s156 = sphi 0, %s155
      %s170 = sphi 0, %s156
      %s174 = sphi 0, %s174
      %s176 = sphi 0, %s174
      %s177 = sphi 0, %s176
      %s191 = sphi 0, %s177
      %s195 = sphi 0, %s195
      %s197 = sphi 0, %s195
      %s198 = sphi 0, %s197
      %s212 = sphi 0, %s198
      %s216 = sphi 0, %s216
      %s218 = sphi 0, %s216
      %s219 = sphi 0, %s218
      %s233 = sphi 0, %s219
      %s237 = sphi 0, %s237
      %s239 = sphi 0, %s237
      %s240 = sphi 0, %s239
      %s254 = sphi 0, %s240
      %s258 = sphi 0, %s258
      %s260 = sphi 0, %s258
      %s261 = sphi 0, %s260
      %s275 = sphi 0, %s261
      %s279 = sphi 0, %s279
      %s281 = sphi 0, %s279
      %s282 = sphi 0, %s281
      %s296 = sphi 0, %s282
      %s300 = sphi 0, %s300
      %s302 = sphi 0, %s300
      %s303 = sphi 0, %s302
      %s317 = sphi 0, %s303
      %s325 = sphi 0, %s327
      %s328 = sphi 0, %s325
      %s329 = sphi 0, %s328
      %s345 = sphi 0, %s329
      %s353 = sphi 0, %s355
      %s356 = sphi 0, %s353
      %s357 = sphi 0, %s356
      %s373 = sphi 0, %s357
      %s381 = sphi 0, %s383
      %s384 = sphi 0, %s381
      %s385 = sphi 0, %s384
      %s401 = sphi 0, %s385
      %s407 = sphi 0, %s409
      %s410 = sphi 0, %s407
      %s411 = sphi 0, %s410
      %s427 = sphi 0, %s411
      %s433 = sphi 0, %s435
      %s436 = sphi 0, %s433
      %s437 = sphi 0, %s436
      %s453 = sphi 0, %s437
      %s459 = sphi 0, %s461
      %s462 = sphi 0, %s459
      %s463 = sphi 0, %s462
      %s479 = sphi 0, %s463
    $region4: #{vq_self_attention.1} parent=1 // loop_header_branch
      %32 = sbr.rel (%p30) target = $region8
    $region5: #{vq_self_attention.1} parent=1 // loop_body
      %s34 = ssub.s32 %s29, 1
      %s35 = ssub.s32 %s29, 2
      %s42 = sadd.s32 1, %s37
      %p43 = scmp.ge.s32.totalorder %s42, 2
      %s44 = scalar_select %p43, 0, %s42
      %s45 = sadd.s32 1, %s36
      %s46 = scalar_select %p43, %s45, %s36
      %p47 = scmp.ge.s32.totalorder %s46, 8
      %s48 = scalar_select %p47, 0, %s46
      %s49 = ssub.s32 %s37, %s44
      %p50 = scmp.eq.s32.totalorder %s49, 0
      %s52 = sadd.s32 %s51, 1
      %s53 = scalar_select %p50, %s51, %s52
      %p56 = pneg %p50
      %p57 = scmp.eq.s32.totalorder %s29, 15
      %p58 = por %p56, %p57
      %p59 = scmp.ne.s32.totalorder %s51, %s54
      %p60 = scmp.eq.s32.totalorder %s29, 0
      %p61 = por %p59, %p60
      %p62 = scmp.ne.s32.totalorder %s51, %s54
      %p63 = scmp.eq.s32.totalorder %s34, 15
      %p64 = por %p62, %p63
      %p65 = scmp.ne.s32.totalorder %s54, %s55
      %p66 = scmp.eq.s32.totalorder %s34, 0
      %p67 = por %p65, %p66
      %p68 = scmp.ne.s32.totalorder %s54, %s55
      %p69 = scmp.eq.s32.totalorder %s35, 15
      %p70 = por %p68, %p69
      %p72 = scmp.ne.s32.totalorder %s55, %s71
      %p73 = scmp.eq.s32.totalorder %s35, 0
      %p74 = por %p72, %p73
      %s75 = ssub.s32 %s36, %s48
      %p76 = scmp.eq.s32.totalorder %s75, 0
      %s78 = sadd.s32 %s77, 1
      %s79 = scalar_select %p76, %s77, %s78
      %p82 = pneg %p76
      %p83 = scmp.eq.s32.totalorder %s29, 15
      %p84 = por %p82, %p83
      %p85 = scmp.ne.s32.totalorder %s77, %s80
      %p86 = scmp.eq.s32.totalorder %s29, 0
      %p87 = por %p85, %p86
      %p88 = scmp.ne.s32.totalorder %s77, %s80
      %p89 = scmp.eq.s32.totalorder %s34, 15
      %p90 = por %p88, %p89
      %p91 = scmp.ne.s32.totalorder %s80, %s81
      %p92 = scmp.eq.s32.totalorder %s34, 0
      %p93 = por %p91, %p92
      %p94 = scmp.ne.s32.totalorder %s80, %s81
      %p95 = scmp.eq.s32.totalorder %s35, 15
      %p96 = por %p94, %p95
      %p98 = scmp.ne.s32.totalorder %s81, %s97
      %p99 = scmp.eq.s32.totalorder %s35, 0
      %p100 = por %p98, %p99
      %s101 = ssub.s32 %s36, %s48
      %p102 = scmp.eq.s32.totalorder %s101, 0
      %s104 = sadd.s32 %s103, 1
      %s105 = scalar_select %p102, %s103, %s104
      %p108 = pneg %p102
      %p109 = scmp.eq.s32.totalorder %s29, 15
      %p110 = por %p108, %p109
      %p111 = scmp.ne.s32.totalorder %s103, %s106
      %p112 = scmp.eq.s32.totalorder %s29, 0
      %p113 = por %p111, %p112
      %p114 = scmp.ne.s32.totalorder %s103, %s106
      %p115 = scmp.eq.s32.totalorder %s34, 15
      %p116 = por %p114, %p115
      %p117 = scmp.ne.s32.totalorder %s106, %s107
      %p118 = scmp.eq.s32.totalorder %s34, 0
      %p119 = por %p117, %p118
      %p120 = scmp.ne.s32.totalorder %s106, %s107
      %p121 = scmp.eq.s32.totalorder %s35, 15
      %p122 = por %p120, %p121
      %p124 = scmp.ne.s32.totalorder %s107, %s123
      %p125 = scmp.eq.s32.totalorder %s35, 0
      %p126 = por %p124, %p125
      %s127 = ssub.s32 %s36, %s48
      %p128 = scmp.eq.s32.totalorder %s127, 0
      %s130 = sadd.s32 %s129, 1
      %s131 = scalar_select %p128, %s129, %s130
      %p134 = pneg %p128
      %p135 = scmp.eq.s32.totalorder %s29, 15
      %p136 = por %p134, %p135
      %p137 = scmp.ne.s32.totalorder %s129, %s132
      %p138 = scmp.eq.s32.totalorder %s29, 0
      %p139 = por %p137, %p138
      %p140 = scmp.ne.s32.totalorder %s129, %s132
      %p141 = scmp.eq.s32.totalorder %s34, 15
      %p142 = por %p140, %p141
      %p143 = scmp.ne.s32.totalorder %s132, %s133
      %p144 = scmp.eq.s32.totalorder %s34, 0
      %p145 = por %p143, %p144
      %p146 = scmp.ne.s32.totalorder %s132, %s133
      %p147 = scmp.eq.s32.totalorder %s35, 15
      %p148 = por %p146, %p147
      %p150 = scmp.ne.s32.totalorder %s133, %s149
      %p151 = scmp.eq.s32.totalorder %s35, 0
      %p152 = por %p150, %p151
      %s154 = sadd.s32 %s153, 1
      %p157 = scmp.eq.s32.totalorder %s29, 15
      %p158 = scmp.ne.s32.totalorder %s153, %s155
      %p159 = scmp.eq.s32.totalorder %s29, 0
      %p160 = por %p158, %p159
      %p161 = scmp.ne.s32.totalorder %s153, %s155
      %p162 = scmp.eq.s32.totalorder %s34, 15
      %p163 = por %p161, %p162
      %p164 = scmp.ne.s32.totalorder %s155, %s156
      %p165 = scmp.eq.s32.totalorder %s34, 0
      %p166 = por %p164, %p165
      %p167 = scmp.ne.s32.totalorder %s155, %s156
      %p168 = scmp.eq.s32.totalorder %s35, 15
      %p169 = por %p167, %p168
      %p171 = scmp.ne.s32.totalorder %s156, %s170
      %p172 = scmp.eq.s32.totalorder %s35, 0
      %p173 = por %p171, %p172
      %s175 = sadd.s32 %s174, 1
      %p178 = scmp.eq.s32.totalorder %s29, 15
      %p179 = scmp.ne.s32.totalorder %s174, %s176
      %p180 = scmp.eq.s32.totalorder %s29, 0
      %p181 = por %p179, %p180
      %p182 = scmp.ne.s32.totalorder %s174, %s176
      %p183 = scmp.eq.s32.totalorder %s34, 15
      %p184 = por %p182, %p183
      %p185 = scmp.ne.s32.totalorder %s176, %s177
      %p186 = scmp.eq.s32.totalorder %s34, 0
      %p187 = por %p185, %p186
      %p188 = scmp.ne.s32.totalorder %s176, %s177
      %p189 = scmp.eq.s32.totalorder %s35, 15
      %p190 = por %p188, %p189
      %p192 = scmp.ne.s32.totalorder %s177, %s191
      %p193 = scmp.eq.s32.totalorder %s35, 0
      %p194 = por %p192, %p193
      %s196 = sadd.s32 %s195, 1
      %p199 = scmp.eq.s32.totalorder %s29, 15
      %p200 = scmp.ne.s32.totalorder %s195, %s197
      %p201 = scmp.eq.s32.totalorder %s29, 0
      %p202 = por %p200, %p201
      %p203 = scmp.ne.s32.totalorder %s195, %s197
      %p204 = scmp.eq.s32.totalorder %s34, 15
      %p205 = por %p203, %p204
      %p206 = scmp.ne.s32.totalorder %s197, %s198
      %p207 = scmp.eq.s32.totalorder %s34, 0
      %p208 = por %p206, %p207
      %p209 = scmp.ne.s32.totalorder %s197, %s198
      %p210 = scmp.eq.s32.totalorder %s35, 15
      %p211 = por %p209, %p210
      %p213 = scmp.ne.s32.totalorder %s198, %s212
      %p214 = scmp.eq.s32.totalorder %s35, 0
      %p215 = por %p213, %p214
      %s217 = sadd.s32 %s216, 1
      %p220 = scmp.eq.s32.totalorder %s29, 15
      %p221 = scmp.ne.s32.totalorder %s216, %s218
      %p222 = scmp.eq.s32.totalorder %s29, 0
      %p223 = por %p221, %p222
      %p224 = scmp.ne.s32.totalorder %s216, %s218
      %p225 = scmp.eq.s32.totalorder %s34, 15
      %p226 = por %p224, %p225
      %p227 = scmp.ne.s32.totalorder %s218, %s219
      %p228 = scmp.eq.s32.totalorder %s34, 0
      %p229 = por %p227, %p228
      %p230 = scmp.ne.s32.totalorder %s218, %s219
      %p231 = scmp.eq.s32.totalorder %s35, 15
      %p232 = por %p230, %p231
      %p234 = scmp.ne.s32.totalorder %s219, %s233
      %p235 = scmp.eq.s32.totalorder %s35, 0
      %p236 = por %p234, %p235
      %s238 = sadd.s32 %s237, 1
      %p241 = scmp.eq.s32.totalorder %s29, 15
      %p242 = scmp.ne.s32.totalorder %s237, %s239
      %p243 = scmp.eq.s32.totalorder %s29, 0
      %p244 = por %p242, %p243
      %p245 = scmp.ne.s32.totalorder %s237, %s239
      %p246 = scmp.eq.s32.totalorder %s34, 15
      %p247 = por %p245, %p246
      %p248 = scmp.ne.s32.totalorder %s239, %s240
      %p249 = scmp.eq.s32.totalorder %s34, 0
      %p250 = por %p248, %p249
      %p251 = scmp.ne.s32.totalorder %s239, %s240
      %p252 = scmp.eq.s32.totalorder %s35, 15
      %p253 = por %p251, %p252
      %p255 = scmp.ne.s32.totalorder %s240, %s254
      %p256 = scmp.eq.s32.totalorder %s35, 0
      %p257 = por %p255, %p256
      %s259 = sadd.s32 %s258, 1
      %p262 = scmp.eq.s32.totalorder %s29, 15
      %p263 = scmp.ne.s32.totalorder %s258, %s260
      %p264 = scmp.eq.s32.totalorder %s29, 0
      %p265 = por %p263, %p264
      %p266 = scmp.ne.s32.totalorder %s258, %s260
      %p267 = scmp.eq.s32.totalorder %s34, 15
      %p268 = por %p266, %p267
      %p269 = scmp.ne.s32.totalorder %s260, %s261
      %p270 = scmp.eq.s32.totalorder %s34, 0
      %p271 = por %p269, %p270
      %p272 = scmp.ne.s32.totalorder %s260, %s261
      %p273 = scmp.eq.s32.totalorder %s35, 15
      %p274 = por %p272, %p273
      %p276 = scmp.ne.s32.totalorder %s261, %s275
      %p277 = scmp.eq.s32.totalorder %s35, 0
      %p278 = por %p276, %p277
      %s280 = sadd.s32 %s279, 1
      %p283 = scmp.eq.s32.totalorder %s29, 15
      %p284 = scmp.ne.s32.totalorder %s279, %s281
      %p285 = scmp.eq.s32.totalorder %s29, 0
      %p286 = por %p284, %p285
      %p287 = scmp.ne.s32.totalorder %s279, %s281
      %p288 = scmp.eq.s32.totalorder %s34, 15
      %p289 = por %p287, %p288
      %p290 = scmp.ne.s32.totalorder %s281, %s282
      %p291 = scmp.eq.s32.totalorder %s34, 0
      %p292 = por %p290, %p291
      %p293 = scmp.ne.s32.totalorder %s281, %s282
      %p294 = scmp.eq.s32.totalorder %s35, 15
      %p295 = por %p293, %p294
      %p297 = scmp.ne.s32.totalorder %s282, %s296
      %p298 = scmp.eq.s32.totalorder %s35, 0
      %p299 = por %p297, %p298
      %s301 = sadd.s32 %s300, 1
      %p304 = scmp.eq.s32.totalorder %s29, 15
      %p305 = scmp.ne.s32.totalorder %s300, %s302
      %p306 = scmp.eq.s32.totalorder %s29, 0
      %p307 = por %p305, %p306
      %p308 = scmp.ne.s32.totalorder %s300, %s302
      %p309 = scmp.eq.s32.totalorder %s34, 15
      %p310 = por %p308, %p309
      %p311 = scmp.ne.s32.totalorder %s302, %s303
      %p312 = scmp.eq.s32.totalorder %s34, 0
      %p313 = por %p311, %p312
      %p314 = scmp.ne.s32.totalorder %s302, %s303
      %p315 = scmp.eq.s32.totalorder %s35, 15
      %p316 = por %p314, %p315
      %p318 = scmp.ne.s32.totalorder %s303, %s317
      %p319 = scmp.eq.s32.totalorder %s35, 0
      %p320 = por %p318, %p319
      %s321 = ssub.s32 %s36, %s48
      %s322 = ssub.s32 %s37, %s44
      %s323 = sor.u32 %s321, %s322
      %p324 = scmp.eq.s32.totalorder %s323, 0
      %s326 = sadd.s32 %s325, 1
      %s327 = scalar_select %p324, %s325, %s326
      %p330 = pneg %p324
      %p331 = scmp.eq.s32.totalorder %s29, 15
      %p332 = por %p330, %p331
      %p333 = scmp.ne.s32.totalorder %s325, %s328
      %p334 = scmp.eq.s32.totalorder %s29, 0
      %p335 = por %p333, %p334
      %p336 = scmp.ne.s32.totalorder %s325, %s328
      %p337 = scmp.eq.s32.totalorder %s34, 15
      %p338 = por %p336, %p337
      %p339 = scmp.ne.s32.totalorder %s328, %s329
      %p340 = scmp.eq.s32.totalorder %s34, 0
      %p341 = por %p339, %p340
      %p342 = scmp.ne.s32.totalorder %s328, %s329
      %p343 = scmp.eq.s32.totalorder %s35, 15
      %p344 = por %p342, %p343
      %p346 = scmp.ne.s32.totalorder %s329, %s345
      %p347 = scmp.eq.s32.totalorder %s35, 0
      %p348 = por %p346, %p347
      %s349 = ssub.s32 %s36, %s48
      %s350 = ssub.s32 %s37, %s44
      %s351 = sor.u32 %s349, %s350
      %p352 = scmp.eq.s32.totalorder %s351, 0
      %s354 = sadd.s32 %s353, 1
      %s355 = scalar_select %p352, %s353, %s354
      %p358 = pneg %p352
      %p359 = scmp.eq.s32.totalorder %s29, 15
      %p360 = por %p358, %p359
      %p361 = scmp.ne.s32.totalorder %s353, %s356
      %p362 = scmp.eq.s32.totalorder %s29, 0
      %p363 = por %p361, %p362
      %p364 = scmp.ne.s32.totalorder %s353, %s356
      %p365 = scmp.eq.s32.totalorder %s34, 15
      %p366 = por %p364, %p365
      %p367 = scmp.ne.s32.totalorder %s356, %s357
      %p368 = scmp.eq.s32.totalorder %s34, 0
      %p369 = por %p367, %p368
      %p370 = scmp.ne.s32.totalorder %s356, %s357
      %p371 = scmp.eq.s32.totalorder %s35, 15
      %p372 = por %p370, %p371
      %p374 = scmp.ne.s32.totalorder %s357, %s373
      %p375 = scmp.eq.s32.totalorder %s35, 0
      %p376 = por %p374, %p375
      %s377 = ssub.s32 %s36, %s48
      %s378 = ssub.s32 %s37, %s44
      %s379 = sor.u32 %s377, %s378
      %p380 = scmp.eq.s32.totalorder %s379, 0
      %s382 = sadd.s32 %s381, 1
      %s383 = scalar_select %p380, %s381, %s382
      %p386 = pneg %p380
      %p387 = scmp.eq.s32.totalorder %s29, 15
      %p388 = por %p386, %p387
      %p389 = scmp.ne.s32.totalorder %s381, %s384
      %p390 = scmp.eq.s32.totalorder %s29, 0
      %p391 = por %p389, %p390
      %p392 = scmp.ne.s32.totalorder %s381, %s384
      %p393 = scmp.eq.s32.totalorder %s34, 15
      %p394 = por %p392, %p393
      %p395 = scmp.ne.s32.totalorder %s384, %s385
      %p396 = scmp.eq.s32.totalorder %s34, 0
      %p397 = por %p395, %p396
      %p398 = scmp.ne.s32.totalorder %s384, %s385
      %p399 = scmp.eq.s32.totalorder %s35, 15
      %p400 = por %p398, %p399
      %p402 = scmp.ne.s32.totalorder %s385, %s401
      %p403 = scmp.eq.s32.totalorder %s35, 0
      %p404 = por %p402, %p403
      %s405 = ssub.s32 %s36, %s48
      %p406 = scmp.eq.s32.totalorder %s405, 0
      %s408 = sadd.s32 %s407, 1
      %s409 = scalar_select %p406, %s407, %s408
      %p412 = pneg %p406
      %p413 = scmp.eq.s32.totalorder %s29, 15
      %p414 = por %p412, %p413
      %p415 = scmp.ne.s32.totalorder %s407, %s410
      %p416 = scmp.eq.s32.totalorder %s29, 0
      %p417 = por %p415, %p416
      %p418 = scmp.ne.s32.totalorder %s407, %s410
      %p419 = scmp.eq.s32.totalorder %s34, 15
      %p420 = por %p418, %p419
      %p421 = scmp.ne.s32.totalorder %s410, %s411
      %p422 = scmp.eq.s32.totalorder %s34, 0
      %p423 = por %p421, %p422
      %p424 = scmp.ne.s32.totalorder %s410, %s411
      %p425 = scmp.eq.s32.totalorder %s35, 15
      %p426 = por %p424, %p425
      %p428 = scmp.ne.s32.totalorder %s411, %s427
      %p429 = scmp.eq.s32.totalorder %s35, 0
      %p430 = por %p428, %p429
      %s431 = ssub.s32 %s36, %s48
      %p432 = scmp.eq.s32.totalorder %s431, 0
      %s434 = sadd.s32 %s433, 1
      %s435 = scalar_select %p432, %s433, %s434
      %p438 = pneg %p432
      %p439 = scmp.eq.s32.totalorder %s29, 15
      %p440 = por %p438, %p439
      %p441 = scmp.ne.s32.totalorder %s433, %s436
      %p442 = scmp.eq.s32.totalorder %s29, 0
      %p443 = por %p441, %p442
      %p444 = scmp.ne.s32.totalorder %s433, %s436
      %p445 = scmp.eq.s32.totalorder %s34, 15
      %p446 = por %p444, %p445
      %p447 = scmp.ne.s32.totalorder %s436, %s437
      %p448 = scmp.eq.s32.totalorder %s34, 0
      %p449 = por %p447, %p448
      %p450 = scmp.ne.s32.totalorder %s436, %s437
      %p451 = scmp.eq.s32.totalorder %s35, 15
      %p452 = por %p450, %p451
      %p454 = scmp.ne.s32.totalorder %s437, %s453
      %p455 = scmp.eq.s32.totalorder %s35, 0
      %p456 = por %p454, %p455
      %s457 = ssub.s32 %s36, %s48
      %p458 = scmp.eq.s32.totalorder %s457, 0
      %s460 = sadd.s32 %s459, 1
      %s461 = scalar_select %p458, %s459, %s460
      %p464 = pneg %p458
      %p465 = scmp.eq.s32.totalorder %s29, 15
      %p466 = por %p464, %p465
      %p467 = scmp.ne.s32.totalorder %s459, %s462
      %p468 = scmp.eq.s32.totalorder %s29, 0
      %p469 = por %p467, %p468
      %p470 = scmp.ne.s32.totalorder %s459, %s462
      %p471 = scmp.eq.s32.totalorder %s34, 15
      %p472 = por %p470, %p471
      %p473 = scmp.ne.s32.totalorder %s462, %s463
      %p474 = scmp.eq.s32.totalorder %s34, 0
      %p475 = por %p473, %p474
      %p476 = scmp.ne.s32.totalorder %s462, %s463
      %p477 = scmp.eq.s32.totalorder %s35, 15
      %p478 = por %p476, %p477
      %p480 = scmp.ne.s32.totalorder %s463, %s479
      %p481 = scmp.eq.s32.totalorder %s35, 0
      %p482 = por %p480, %p481
      %p483 = scmp.le.s32.totalorder 1, %s29
      %p484 = scmp.lt.s32.totalorder %s29, 17
      %p485 = pnand %p483, %p484
      %p486 = pneg %p485
      // Predicated region
      $region9: #{vq_self_attention.1} parent=5 // pred_check
        _
      $region10: #{vq_self_attention.1} parent=5 // pred_check_branch
        %488 = sbr.rel (%p485) target = $region12
      $region11: #{vq_self_attention.1} parent=5 // pred_region
        %s489 = ssub.s32 %s29, 1
        // Predicated region
        $region13: #{vq_self_attention.1} parent=11 // pred_check
          %p490 = pneg %p166
        $region14: #{vq_self_attention.1} parent=11 // pred_check_branch
          %492 = sbr.rel (%p490) target = $region16
        $region15: #{vq_self_attention.1} parent=11 // pred_region
          _
        $region16: #{vq_self_attention.1} parent=11 // pred_fallthru
          _
        // Predicated region
        $region17: #{vq_self_attention.1} parent=11 // pred_check
          %p493 = pneg %p187
        $region18: #{vq_self_attention.1} parent=11 // pred_check_branch
          %495 = sbr.rel (%p493) target = $region20
        $region19: #{vq_self_attention.1} parent=11 // pred_region
          _
        $region20: #{vq_self_attention.1} parent=11 // pred_fallthru
          _
        // Predicated region
        $region21: #{vq_self_attention.1} parent=11 // pred_check
          %p496 = pneg %p208
        $region22: #{vq_self_attention.1} parent=11 // pred_check_branch
          %498 = sbr.rel (%p496) target = $region24
        $region23: #{vq_self_attention.1} parent=11 // pred_region
          _
        $region24: #{vq_self_attention.1} parent=11 // pred_fallthru
          _
        // Predicated region
        $region25: #{vq_self_attention.1} parent=11 // pred_check
          %p499 = pneg %p229
        $region26: #{vq_self_attention.1} parent=11 // pred_check_branch
          %501 = sbr.rel (%p499) target = $region28
        $region27: #{vq_self_attention.1} parent=11 // pred_region
          _
        $region28: #{vq_self_attention.1} parent=11 // pred_fallthru
          _
        // Predicated region
        $region29: #{vq_self_attention.1} parent=11 // pred_check
          %p502 = pneg %p250
        $region30: #{vq_self_attention.1} parent=11 // pred_check_branch
          %504 = sbr.rel (%p502) target = $region32
        $region31: #{vq_self_attention.1} parent=11 // pred_region
          _
        $region32: #{vq_self_attention.1} parent=11 // pred_fallthru
          _
        // Predicated region
        $region33: #{vq_self_attention.1} parent=11 // pred_check
          %p505 = pneg %p271
        $region34: #{vq_self_attention.1} parent=11 // pred_check_branch
          %507 = sbr.rel (%p505) target = $region36
        $region35: #{vq_self_attention.1} parent=11 // pred_region
          _
        $region36: #{vq_self_attention.1} parent=11 // pred_fallthru
          _
        // Predicated region
        $region37: #{vq_self_attention.1} parent=11 // pred_check
          %p508 = pneg %p292
        $region38: #{vq_self_attention.1} parent=11 // pred_check_branch
          %510 = sbr.rel (%p508) target = $region40
        $region39: #{vq_self_attention.1} parent=11 // pred_region
          _
        $region40: #{vq_self_attention.1} parent=11 // pred_fallthru
          _
        // Predicated region
        $region41: #{vq_self_attention.1} parent=11 // pred_check
          %p511 = pneg %p313
        $region42: #{vq_self_attention.1} parent=11 // pred_check_branch
          %513 = sbr.rel (%p511) target = $region44
        $region43: #{vq_self_attention.1} parent=11 // pred_region
          _
        $region44: #{vq_self_attention.1} parent=11 // pred_fallthru
          _
      $region12: #{vq_self_attention.1} parent=5 // pred_fallthru
        _
      %p514 = scmp.lt.s32.totalorder %s29, 16
      // Predicated region
      $region45: #{vq_self_attention.1} parent=5 // pred_check
        %p515 = pneg %p514
      $region46: #{vq_self_attention.1} parent=5 // pred_check_branch
        %517 = sbr.rel (%p515) target = $region48
      $region47: #{vq_self_attention.1} parent=5 // pred_region
        // Predicated region
        $region49: #{vq_self_attention.1} parent=47 // pred_check
          %p518 = pneg %p61
        $region50: #{vq_self_attention.1} parent=47 // pred_check_branch
          %520 = sbr.rel (%p518) target = $region52
        $region51: #{vq_self_attention.1} parent=47 // pred_region
          %p521 = scmp.lt.s32.totalorder %s37, 1
          %s522 = scalar_select %p521, %s37, 1
          %s523 = smul.addr %s522, 8
          %s524 = scalar_lea.vmem %s0, %s523
        $region52: #{vq_self_attention.1} parent=47 // pred_fallthru
          _
        // Predicated region
        $region53: #{vq_self_attention.1} parent=47 // pred_check
          %p525 = pneg %p87
        $region54: #{vq_self_attention.1} parent=47 // pred_check_branch
          %527 = sbr.rel (%p525) target = $region56
        $region55: #{vq_self_attention.1} parent=47 // pred_region
          %p528 = scmp.lt.s32.totalorder %s36, 7
          %s529 = scalar_select %p528, %s36, 7
          %s530 = smul.addr %s529, 4
          %s531 = smul.addr %s530, 8
          %s532 = scalar_lea.vmem %s1, %s531
        $region56: #{vq_self_attention.1} parent=47 // pred_fallthru
          _
        // Predicated region
        $region57: #{vq_self_attention.1} parent=47 // pred_check
          %p533 = pneg %p113
        $region58: #{vq_self_attention.1} parent=47 // pred_check_branch
          %535 = sbr.rel (%p533) target = $region60
        $region59: #{vq_self_attention.1} parent=47 // pred_region
          %p536 = scmp.lt.s32.totalorder %s36, 7
          %s537 = scalar_select %p536, %s36, 7
          %s538 = scalar_lea.vmem %s2, %s537
        $region60: #{vq_self_attention.1} parent=47 // pred_fallthru
          _
        // Predicated region
        $region61: #{vq_self_attention.1} parent=47 // pred_check
          %p539 = pneg %p139
        $region62: #{vq_self_attention.1} parent=47 // pred_check_branch
          %541 = sbr.rel (%p539) target = $region64
        $region63: #{vq_self_attention.1} parent=47 // pred_region
          %p542 = scmp.lt.s32.totalorder %s36, 7
          %s543 = scalar_select %p542, %s36, 7
          %s544 = scalar_lea.vmem %s3, %s543
        $region64: #{vq_self_attention.1} parent=47 // pred_fallthru
          _
      $region48: #{vq_self_attention.1} parent=5 // pred_fallthru
        _
      %p545 = scmp.le.s32.totalorder 1, %s29
      %p546 = scmp.lt.s32.totalorder %s29, 17
      %p547 = pnand %p545, %p546
      %p548 = pneg %p547
      // Predicated region
      $region65: #{vq_self_attention.1} parent=5 // pred_check
        _
      $region66: #{vq_self_attention.1} parent=5 // pred_check_branch
        %550 = sbr.rel (%p547) target = $region68
      $region67: #{vq_self_attention.1} parent=5 // pred_region
        %s551 = ssub.s32 %s29, 1
        %p552 = scmp.lt.s32.totalorder %s39, 1
        %s553 = scalar_select %p552, %s39, 1
        %s554 = smul.addr %s553, 8
        %s555 = scalar_lea.vmem %s0, %s554
        %p556 = pneg %p67
        %p557 = pneg %p64
        %p558 = scmp.lt.s32.totalorder %s38, 7
        %s559 = scalar_select %p558, %s38, 7
        %s560 = smul.addr %s559, 4
        %s561 = smul.addr %s560, 8
        %s562 = scalar_lea.vmem %s1, %s561
        %p563 = pneg %p93
        %p564 = pneg %p90
        %p565 = scmp.lt.s32.totalorder %s38, 7
        %s566 = scalar_select %p565, %s38, 7
        %s567 = scalar_lea.vmem %s2, %s566
        %p568 = pneg %p119
        %p569 = pneg %p116
        %p570 = scmp.lt.s32.totalorder %s38, 7
        %s571 = scalar_select %p570, %s38, 7
        %s572 = scalar_lea.vmem %s3, %s571
        %p573 = pneg %p145
        %p574 = pneg %p142
        %p575 = pneg %p166
        %p576 = pneg %p163
        %p577 = pneg %p187
        %p578 = pneg %p184
        %p579 = pneg %p208
        %p580 = pneg %p205
        %p581 = pneg %p229
        %p582 = pneg %p226
        %p583 = pneg %p250
        %p584 = pneg %p247
        %p585 = pneg %p271
        %p586 = pneg %p268
        %p587 = pneg %p292
        %p588 = pneg %p289
        %p589 = pneg %p313
        %p590 = pneg %p310
        %p591 = pneg %p341
        %p592 = pneg %p338
        %p593 = scmp.lt.s32.totalorder %s38, 7
        %s594 = scalar_select %p593, %s38, 7
        %p595 = scmp.lt.s32.totalorder %s39, 1
        %s596 = scalar_select %p595, %s39, 1
        %s597 = smul.addr %s594, 2
        %s598 = sadd.s32 %s596, %s597
        %s599 = smul.addr %s598, 8
        %s600 = scalar_lea.vmem %s12, %s599
        %p601 = pneg %p369
        %p602 = pneg %p366
        %p603 = scmp.lt.s32.totalorder %s38, 7
        %s604 = scalar_select %p603, %s38, 7
        %p605 = scmp.lt.s32.totalorder %s39, 1
        %s606 = scalar_select %p605, %s39, 1
        %s607 = smul.addr %s604, 2
        %s608 = sadd.s32 %s606, %s607
        %s609 = smul.addr %s608, 8
        %s610 = scalar_lea.vmem %s13, %s609
        %p611 = pneg %p397
        %p612 = pneg %p394
        %p613 = scmp.lt.s32.totalorder %s38, 7
        %s614 = scalar_select %p613, %s38, 7
        %p615 = scmp.lt.s32.totalorder %s39, 1
        %s616 = scalar_select %p615, %s39, 1
        %s617 = smul.addr %s614, 2
        %s618 = sadd.s32 %s616, %s617
        %s619 = smul.addr %s618, 8
        %s620 = scalar_lea.vmem %s14, %s619
        %p621 = pneg %p423
        %p622 = pneg %p420
        %s623 = sand.u32 %s410, 1
        %s624 = scalar_lea.sflag [#allocation6], %s623
        %s625 = sand.u32 %s410, 1
        %s626 = smul.addr %s625, 64
        %s627 = scalar_lea.vmem [#allocation5], %s626
        %p628 = pneg %p449
        %p629 = pneg %p446
        %p630 = scmp.lt.s32.totalorder %s38, 7
        %s631 = scalar_select %p630, %s38, 7
        %s632 = scalar_lea.vmem %s16, %s631
        %p633 = pneg %p475
        %p634 = pneg %p472
        %p635 = scmp.lt.s32.totalorder %s38, 7
        %s636 = scalar_select %p635, %s38, 7
        %s637 = scalar_lea.vmem %s17, %s636
        %p638 = scmp.lt.s32.totalorder %s39, 1
        %s639 = scalar_select %p638, %s39, 1
        %s640 = smul.addr %s639, 8
        %s641 = scalar_lea.vmem %s0, %s640
        %p642 = scmp.lt.s32.totalorder %s38, 7
        %s643 = scalar_select %p642, %s38, 7
        %s644 = smul.addr %s643, 4
        %s645 = smul.addr %s644, 8
        %s646 = scalar_lea.vmem %s1, %s645
        %p647 = scmp.lt.s32.totalorder %s38, 7
        %s648 = scalar_select %p647, %s38, 7
        %s649 = scalar_lea.vmem %s2, %s648
        %p650 = scmp.lt.s32.totalorder %s38, 7
        %s651 = scalar_select %p650, %s38, 7
        %s652 = scalar_lea.vmem %s3, %s651
        %p653 = scmp.lt.s32.totalorder %s38, 7
        %s654 = scalar_select %p653, %s38, 7
        %p655 = scmp.lt.s32.totalorder %s39, 1
        %s656 = scalar_select %p655, %s39, 1
        %s657 = smul.addr %s654, 2
        %s658 = sadd.s32 %s656, %s657
        %s659 = smul.addr %s658, 8
        %s660 = scalar_lea.vmem %s12, %s659
        %p661 = scmp.lt.s32.totalorder %s38, 7
        %s662 = scalar_select %p661, %s38, 7
        %p663 = scmp.lt.s32.totalorder %s39, 1
        %s664 = scalar_select %p663, %s39, 1
        %s665 = smul.addr %s662, 2
        %s666 = sadd.s32 %s664, %s665
        %s667 = smul.addr %s666, 8
        %s668 = scalar_lea.vmem %s13, %s667
        %p669 = scmp.lt.s32.totalorder %s38, 7
        %s670 = scalar_select %p669, %s38, 7
        %p671 = scmp.lt.s32.totalorder %s39, 1
        %s672 = scalar_select %p671, %s39, 1
        %s673 = smul.addr %s670, 2
        %s674 = sadd.s32 %s672, %s673
        %s675 = smul.addr %s674, 8
        %s676 = scalar_lea.vmem %s14, %s675
        %p677 = scmp.lt.s32.totalorder %s38, 7
        %s678 = scalar_select %p677, %s38, 7
        %s679 = scalar_lea.vmem %s16, %s678
        %p680 = scmp.lt.s32.totalorder %s38, 7
        %s681 = scalar_select %p680, %s38, 7
        %s682 = scalar_lea.vmem %s17, %s681
        %p683 = scmp.eq.s32.totalorder %s39, 0
        // Predicated region
        $region69: #{vq_self_attention.1} parent=67 // pred_check
          %p684 = pneg %p683
        $region70: #{vq_self_attention.1} parent=67 // pred_check_branch
          %686 = sbr.rel (%p684) target = $region72
        $region71: #{vq_self_attention.1} parent=67 // pred_region
          %vm687 = vcmask 0
          %688 = vst.msk [vmem:[#allocation2] sm:$0x1] %vm687, 0.0
          %vm689 = vcmask 516096
          %690 = vst.msk [vmem:[#allocation3] sm:$0x1] %vm689, 0.0
        $region72: #{vq_self_attention.1} parent=67 // pred_fallthru
          _
        %v691 = vld [vmem:[%s641] sm:$0xff]
        %v692 = vld [vmem:[%s4] sm:$0xff]
        %v693 = vld [vmem:[%s4 + $0x8] sm:$0xff]
        %v694 = vld [vmem:[%s4 + $0x10] sm:$0xff]
        %v695 = vld [vmem:[%s4 + $0x18] sm:$0xff]
        %v696 = vld [vmem:[%s4 + $0x20] sm:$0xff]
        %v697 = vld [vmem:[%s4 + $0x28] sm:$0xff]
        %v698 = vld [vmem:[%s4 + $0x30] sm:$0xff]
        %v699 = vld [vmem:[%s4 + $0x38] sm:$0xff]
        %v700 = vld [vmem:[#allocation4] sm:$0x1]
        %v701 = vmul.f32 %v700, 1.442695
        %v702 = vpow.pop %v701
        %v703 = vld [vmem:[%s5] sm:$0xf]
        %v704 = vld [vmem:[%s6] sm:$0x1]
        %v706 = vlaneseq
        %v707 = vshrl.u32 %v706, 7
        %v708 = vsub.s32 0, %v707
        %v709 = vrot.slane %v704, %v708
        %vm711 = vcmask 31744
        %v713 = vsel %vm711, %v692, 0
        %v716 = vsel %vm711, %v693, 0
        %v719 = vsel %vm711, %v694, 0
        %v722 = vsel %vm711, %v695, 0
        %v725 = vsel %vm711, %v696, 0
        %v728 = vsel %vm711, %v697, 0
        %v731 = vsel %vm711, %v698, 0
        %v734 = vsel %vm711, %v699, 0
        %vm736 = vcmask 1043456
        %v738 = vsel %vm736, %v703, 0
        %740 = vmatprep.subr.mxu0 0.0
        %741 = vmatpush1.msra.mxu0 0.0
        %742 = vmatprep.subr.mxu0 0.0
        %743 = vmatpush1.msra.mxu0 0.0
        %744 = vmatprep.subr.mxu0 0.0
        %745 = vmatpush1.msra.mxu0 0.0
        %746 = vmatprep.subr.mxu0 0.0
        %747 = vmatpush1.msra.mxu0 0.0
        %748 = vmatprep.subr.mxu0 0.0
        %749 = vmatpush1.msra.mxu0 0.0
        %750 = vmatprep.subr.mxu0 0.0
        %751 = vmatpush1.msra.mxu0 0.0
        %752 = vmatprep.subr.mxu0 0.0
        %753 = vmatpush1.msra.mxu0 0.0
        %754 = vmatprep.subr.mxu0 0.0
        %755 = vmatpush1.msra.mxu0 0.0
        %756 = vmatprep.subr.mxu0 0.0
        %757 = vmatpush1.msra.mxu0 0.0
        %758 = vmatprep.subr.mxu0 0.0
        %759 = vmatpush1.msra.mxu0 0.0
        %760 = vmatprep.subr.mxu0 0.0
        %761 = vmatpush1.msra.mxu0 0.0
        %762 = vmatprep.subr.mxu0 0.0
        %763 = vmatpush1.msra.mxu0 0.0
        %764 = vmatprep.subr.mxu0 0.0
        %765 = vmatpush1.msra.mxu0 0.0
        %766 = vmatprep.subr.mxu0 0.0
        %767 = vmatpush1.msra.mxu0 0.0
        %768 = vmatprep.subr.mxu0 0.0
        %769 = vmatpush1.msra.mxu0 0.0
        %770 = vmatprep.subr.mxu0 0.0
        %771 = vmatpush1.msra.mxu0 %v738
        %772 = vmatprep.subr.mxu0 0.0
        %773 = vmatpush2.msra.mxu0 0.0
        %774 = vmatprep.subr.mxu0 0.0
        %775 = vmatpush2.msra.mxu0 0.0
        %776 = vmatprep.subr.mxu0 0.0
        %777 = vmatpush2.msra.mxu0 0.0
        %778 = vmatprep.subr.mxu0 0.0
        %779 = vmatpush2.msra.mxu0 0.0
        %780 = vmatprep.subr.mxu0 0.0
        %781 = vmatpush2.msra.mxu0 0.0
        %782 = vmatprep.subr.mxu0 0.0
        %783 = vmatpush2.msra.mxu0 0.0
        %784 = vmatprep.subr.mxu0 0.0
        %785 = vmatpush2.msra.mxu0 0.0
        %786 = vmatprep.subr.mxu0 0.0
        %787 = vmatpush2.msra.mxu0 0.0
        %788 = vmatprep.subr.mxu0 0.0
        %789 = vmatpush2.msra.mxu0 0.0
        %790 = vmatprep.subr.mxu0 0.0
        %791 = vmatpush2.msra.mxu0 0.0
        %792 = vmatprep.subr.mxu0 0.0
        %793 = vmatpush2.msra.mxu0 0.0
        %794 = vmatprep.subr.mxu0 0.0
        %795 = vmatpush2.msra.mxu0 0.0
        %796 = vmatprep.subr.mxu0 0.0
        %797 = vmatpush2.msra.mxu0 0.0
        %798 = vmatprep.subr.mxu0 0.0
        %799 = vmatpush2.msra.mxu0 0.0
        %800 = vmatprep.subr.mxu0 0.0
        %801 = vmatpush2.msra.mxu0 0.0
        %802 = vmatprep.subr.mxu0 0.0
        %803 = vmatpush2.msra.mxu0 0.0
        %804 = vmatprep.mubr.f32.mxu0 0.0
        %805 = vmatmul.mubr.f32.gmra.mxu0 %v713
        %v806 = vpop.f32.mrf.mxu0
        %v807 = vadd.f32 %v709, %v806
        %v808 = vpop.f32.mrf.mxu0
        %809 = vmatprep.mubr.f32.mxu0 0.0
        %810 = vmatmul.mubr.f32.gmra.mxu0 %v716
        %v811 = vpop.f32.mrf.mxu0
        %v812 = vadd.f32 %v709, %v811
        %v813 = vpop.f32.mrf.mxu0
        %814 = vmatprep.mubr.f32.mxu0 0.0
        %815 = vmatmul.mubr.f32.gmra.mxu0 %v719
        %v816 = vpop.f32.mrf.mxu0
        %v817 = vadd.f32 %v709, %v816
        %v818 = vpop.f32.mrf.mxu0
        %819 = vmatprep.mubr.f32.mxu0 0.0
        %820 = vmatmul.mubr.f32.gmra.mxu0 %v722
        %v821 = vpop.f32.mrf.mxu0
        %v822 = vadd.f32 %v709, %v821
        %v823 = vpop.f32.mrf.mxu0
        %824 = vmatprep.mubr.f32.mxu0 0.0
        %825 = vmatmul.mubr.f32.gmra.mxu0 %v725
        %v826 = vpop.f32.mrf.mxu0
        %v827 = vadd.f32 %v709, %v826
        %v828 = vpop.f32.mrf.mxu0
        %829 = vmatprep.mubr.f32.mxu0 0.0
        %830 = vmatmul.mubr.f32.gmra.mxu0 %v728
        %v831 = vpop.f32.mrf.mxu0
        %v832 = vadd.f32 %v709, %v831
        %v833 = vpop.f32.mrf.mxu0
        %834 = vmatprep.mubr.f32.mxu0 0.0
        %835 = vmatmul.mubr.f32.gmra.mxu0 %v731
        %v836 = vpop.f32.mrf.mxu0
        %v837 = vadd.f32 %v709, %v836
        %v838 = vpop.f32.mrf.mxu0
        %839 = vmatprep.mubr.f32.mxu0 0.0
        %840 = vmatmul.mubr.f32.gmra.mxu0 %v734
        %v841 = vpop.f32.mrf.mxu0
        %v842 = vadd.f32 %v709, %v841
        %v843 = vpop.f32.mrf.mxu0
        %844 = vdwg.mxu0
        %v845 = vld [vmem:[%s7] sm:$0xf]
        %v846 = vld [vmem:[%s8] sm:$0x1]
        %v848 = vlaneseq
        %v849 = vshrl.u32 %v848, 7
        %v850 = vsub.s32 0, %v849
        %v851 = vrot.slane %v846, %v850
        %v854 = vsel %vm736, %v845, 0
        %856 = vmatprep.subr.mxu0 0.0
        %857 = vmatpush1.msra.mxu0 0.0
        %858 = vmatprep.subr.mxu0 0.0
        %859 = vmatpush1.msra.mxu0 0.0
        %860 = vmatprep.subr.mxu0 0.0
        %861 = vmatpush1.msra.mxu0 0.0
        %862 = vmatprep.subr.mxu0 0.0
        %863 = vmatpush1.msra.mxu0 0.0
        %864 = vmatprep.subr.mxu0 0.0
        %865 = vmatpush1.msra.mxu0 0.0
        %866 = vmatprep.subr.mxu0 0.0
        %867 = vmatpush1.msra.mxu0 0.0
        %868 = vmatprep.subr.mxu0 0.0
        %869 = vmatpush1.msra.mxu0 0.0
        %870 = vmatprep.subr.mxu0 0.0
        %871 = vmatpush1.msra.mxu0 0.0
        %872 = vmatprep.subr.mxu0 0.0
        %873 = vmatpush1.msra.mxu0 0.0
        %874 = vmatprep.subr.mxu0 0.0
        %875 = vmatpush1.msra.mxu0 0.0
        %876 = vmatprep.subr.mxu0 0.0
        %877 = vmatpush1.msra.mxu0 0.0
        %878 = vmatprep.subr.mxu0 0.0
        %879 = vmatpush1.msra.mxu0 0.0
        %880 = vmatprep.subr.mxu0 0.0
        %881 = vmatpush1.msra.mxu0 0.0
        %882 = vmatprep.subr.mxu0 0.0
        %883 = vmatpush1.msra.mxu0 0.0
        %884 = vmatprep.subr.mxu0 0.0
        %885 = vmatpush1.msra.mxu0 0.0
        %886 = vmatprep.subr.mxu0 0.0
        %887 = vmatpush1.msra.mxu0 %v854
        %888 = vmatprep.subr.mxu0 0.0
        %889 = vmatpush2.msra.mxu0 0.0
        %890 = vmatprep.subr.mxu0 0.0
        %891 = vmatpush2.msra.mxu0 0.0
        %892 = vmatprep.subr.mxu0 0.0
        %893 = vmatpush2.msra.mxu0 0.0
        %894 = vmatprep.subr.mxu0 0.0
        %895 = vmatpush2.msra.mxu0 0.0
        %896 = vmatprep.subr.mxu0 0.0
        %897 = vmatpush2.msra.mxu0 0.0
        %898 = vmatprep.subr.mxu0 0.0
        %899 = vmatpush2.msra.mxu0 0.0
        %900 = vmatprep.subr.mxu0 0.0
        %901 = vmatpush2.msra.mxu0 0.0
        %902 = vmatprep.subr.mxu0 0.0
        %903 = vmatpush2.msra.mxu0 0.0
        %904 = vmatprep.subr.mxu0 0.0
        %905 = vmatpush2.msra.mxu0 0.0
        %906 = vmatprep.subr.mxu0 0.0
        %907 = vmatpush2.msra.mxu0 0.0
        %908 = vmatprep.subr.mxu0 0.0
        %909 = vmatpush2.msra.mxu0 0.0
        %910 = vmatprep.subr.mxu0 0.0
        %911 = vmatpush2.msra.mxu0 0.0
        %912 = vmatprep.subr.mxu0 0.0
        %913 = vmatpush2.msra.mxu0 0.0
        %914 = vmatprep.subr.mxu0 0.0
        %915 = vmatpush2.msra.mxu0 0.0
        %916 = vmatprep.subr.mxu0 0.0
        %917 = vmatpush2.msra.mxu0 0.0
        %918 = vmatprep.subr.mxu0 0.0
        %919 = vmatpush2.msra.mxu0 0.0
        %920 = vmatprep.mubr.f32.mxu0 0.0
        %921 = vmatmul.mubr.f32.gmra.mxu0 %v713
        %v922 = vpop.f32.mrf.mxu0
        %v923 = vadd.f32 %v851, %v922
        %v924 = vpop.f32.mrf.mxu0
        %925 = vmatprep.mubr.f32.mxu0 0.0
        %926 = vmatmul.mubr.f32.gmra.mxu0 %v716
        %v927 = vpop.f32.mrf.mxu0
        %v928 = vadd.f32 %v851, %v927
        %v929 = vpop.f32.mrf.mxu0
        %930 = vmatprep.mubr.f32.mxu0 0.0
        %931 = vmatmul.mubr.f32.gmra.mxu0 %v719
        %v932 = vpop.f32.mrf.mxu0
        %v933 = vadd.f32 %v851, %v932
        %v934 = vpop.f32.mrf.mxu0
        %935 = vmatprep.mubr.f32.mxu0 0.0
        %936 = vmatmul.mubr.f32.gmra.mxu0 %v722
        %v937 = vpop.f32.mrf.mxu0
        %v938 = vadd.f32 %v851, %v937
        %v939 = vpop.f32.mrf.mxu0
        %940 = vmatprep.mubr.f32.mxu0 0.0
        %941 = vmatmul.mubr.f32.gmra.mxu0 %v725
        %v942 = vpop.f32.mrf.mxu0
        %v943 = vadd.f32 %v851, %v942
        %v944 = vpop.f32.mrf.mxu0
        %945 = vmatprep.mubr.f32.mxu0 0.0
        %946 = vmatmul.mubr.f32.gmra.mxu0 %v728
        %v947 = vpop.f32.mrf.mxu0
        %v948 = vadd.f32 %v851, %v947
        %v949 = vpop.f32.mrf.mxu0
        %950 = vmatprep.mubr.f32.mxu0 0.0
        %951 = vmatmul.mubr.f32.gmra.mxu0 %v731
        %v952 = vpop.f32.mrf.mxu0
        %v953 = vadd.f32 %v851, %v952
        %v954 = vpop.f32.mrf.mxu0
        %955 = vmatprep.mubr.f32.mxu0 0.0
        %956 = vmatmul.mubr.f32.gmra.mxu0 %v734
        %v957 = vpop.f32.mrf.mxu0
        %v958 = vadd.f32 %v851, %v957
        %v959 = vpop.f32.mrf.mxu0
        %960 = vdwg.mxu0
        %v962 = vsel %vm711, %v807, 0
        %v965 = vsel %vm711, %v812, 0
        %v968 = vsel %vm711, %v817, 0
        %v971 = vsel %vm711, %v822, 0
        %v974 = vsel %vm711, %v827, 0
        %v977 = vsel %vm711, %v832, 0
        %v980 = vsel %vm711, %v837, 0
        %v983 = vsel %vm711, %v842, 0
        %v986 = vsel %vm711, %v923, 0
        %v989 = vsel %vm711, %v928, 0
        %v992 = vsel %vm711, %v933, 0
        %v995 = vsel %vm711, %v938, 0
        %v998 = vsel %vm711, %v943, 0
        %v1001 = vsel %vm711, %v948, 0
        %v1004 = vsel %vm711, %v953, 0
        %v1007 = vsel %vm711, %v958, 0
        %1009 = vmatprep.subr.mxu0 0.0
        %1010 = vmatpush1.xpose.msra.mxu0 0.0
        %1011 = vmatprep.subr.mxu0 0.0
        %1012 = vmatpush1.xpose.msra.mxu0 0.0
        %1013 = vmatprep.subr.mxu0 0.0
        %1014 = vmatpush1.xpose.msra.mxu0 0.0
        %1015 = vmatprep.subr.mxu0 0.0
        %1016 = vmatpush1.xpose.msra.mxu0 0.0
        %1017 = vmatprep.subr.mxu0 0.0
        %1018 = vmatpush1.xpose.msra.mxu0 0.0
        %1019 = vmatprep.subr.mxu0 0.0
        %1020 = vmatpush1.xpose.msra.mxu0 0.0
        %1021 = vmatprep.subr.mxu0 0.0
        %1022 = vmatpush1.xpose.msra.mxu0 0.0
        %1023 = vmatprep.subr.mxu0 0.0
        %1024 = vmatpush1.xpose.msra.mxu0 0.0
        %1025 = vmatprep.subr.mxu0 0.0
        %1026 = vmatpush1.xpose.msra.mxu0 %v1007
        %1027 = vmatprep.subr.mxu0 0.0
        %1028 = vmatpush1.xpose.msra.mxu0 %v1004
        %1029 = vmatprep.subr.mxu0 0.0
        %1030 = vmatpush1.xpose.msra.mxu0 %v1001
        %1031 = vmatprep.subr.mxu0 0.0
        %1032 = vmatpush1.xpose.msra.mxu0 %v998
        %1033 = vmatprep.subr.mxu0 0.0
        %1034 = vmatpush1.xpose.msra.mxu0 %v995
        %1035 = vmatprep.subr.mxu0 0.0
        %1036 = vmatpush1.xpose.msra.mxu0 %v992
        %1037 = vmatprep.subr.mxu0 0.0
        %1038 = vmatpush1.xpose.msra.mxu0 %v989
        %1039 = vmatprep.subr.mxu0 0.0
        %1040 = vmatpush1.xpose.msra.mxu0 %v986
        %1041 = vmatprep.subr.mxu0 0.0
        %1042 = vmatpush2.xpose.msra.mxu0 0.0
        %1043 = vmatprep.subr.mxu0 0.0
        %1044 = vmatpush2.xpose.msra.mxu0 0.0
        %1045 = vmatprep.subr.mxu0 0.0
        %1046 = vmatpush2.xpose.msra.mxu0 0.0
        %1047 = vmatprep.subr.mxu0 0.0
        %1048 = vmatpush2.xpose.msra.mxu0 0.0
        %1049 = vmatprep.subr.mxu0 0.0
        %1050 = vmatpush2.xpose.msra.mxu0 0.0
        %1051 = vmatprep.subr.mxu0 0.0
        %1052 = vmatpush2.xpose.msra.mxu0 0.0
        %1053 = vmatprep.subr.mxu0 0.0
        %1054 = vmatpush2.xpose.msra.mxu0 0.0
        %1055 = vmatprep.subr.mxu0 0.0
        %1056 = vmatpush2.xpose.msra.mxu0 0.0
        %1057 = vmatprep.subr.mxu0 0.0
        %1058 = vmatpush2.xpose.msra.mxu0 0.0
        %1059 = vmatprep.subr.mxu0 0.0
        %1060 = vmatpush2.xpose.msra.mxu0 0.0
        %1061 = vmatprep.subr.mxu0 0.0
        %1062 = vmatpush2.xpose.msra.mxu0 0.0
        %1063 = vmatprep.subr.mxu0 0.0
        %1064 = vmatpush2.xpose.msra.mxu0 0.0
        %1065 = vmatprep.subr.mxu0 0.0
        %1066 = vmatpush2.xpose.msra.mxu0 0.0
        %1067 = vmatprep.subr.mxu0 0.0
        %1068 = vmatpush2.xpose.msra.mxu0 0.0
        %1069 = vmatprep.subr.mxu0 0.0
        %1070 = vmatpush2.xpose.msra.mxu0 0.0
        %1071 = vmatprep.subr.mxu0 0.0
        %1072 = vmatpush2.xpose.msra.mxu0 0.0
        %1073 = vmatprep.mubr.f32.mxu0 0.0
        %1074 = vmatmul.mubr.f32.gmra.mxu0 %v962
        %v1075 = vpop.f32.mrf.mxu0
        %v1076 = vadd.f32 0.0, %v1075
        %v1077 = vpop.f32.mrf.mxu0
        %1078 = vmatprep.mubr.f32.mxu0 0.0
        %1079 = vmatmul.mubr.f32.gmra.mxu0 %v965
        %v1080 = vpop.f32.mrf.mxu0
        %v1081 = vadd.f32 0.0, %v1080
        %v1082 = vpop.f32.mrf.mxu0
        %1083 = vmatprep.mubr.f32.mxu0 0.0
        %1084 = vmatmul.mubr.f32.gmra.mxu0 %v968
        %v1085 = vpop.f32.mrf.mxu0
        %v1086 = vadd.f32 0.0, %v1085
        %v1087 = vpop.f32.mrf.mxu0
        %1088 = vmatprep.mubr.f32.mxu0 0.0
        %1089 = vmatmul.mubr.f32.gmra.mxu0 %v971
        %v1090 = vpop.f32.mrf.mxu0
        %v1091 = vadd.f32 0.0, %v1090
        %v1092 = vpop.f32.mrf.mxu0
        %1093 = vmatprep.mubr.f32.mxu0 0.0
        %1094 = vmatmul.mubr.f32.gmra.mxu0 %v974
        %v1095 = vpop.f32.mrf.mxu0
        %v1096 = vadd.f32 0.0, %v1095
        %v1097 = vpop.f32.mrf.mxu0
        %1098 = vmatprep.mubr.f32.mxu0 0.0
        %1099 = vmatmul.mubr.f32.gmra.mxu0 %v977
        %v1100 = vpop.f32.mrf.mxu0
        %v1101 = vadd.f32 0.0, %v1100
        %v1102 = vpop.f32.mrf.mxu0
        %1103 = vmatprep.mubr.f32.mxu0 0.0
        %1104 = vmatmul.mubr.f32.gmra.mxu0 %v980
        %v1105 = vpop.f32.mrf.mxu0
        %v1106 = vadd.f32 0.0, %v1105
        %v1107 = vpop.f32.mrf.mxu0
        %1108 = vmatprep.mubr.f32.mxu0 0.0
        %1109 = vmatmul.mubr.f32.gmra.mxu0 %v983
        %v1110 = vpop.f32.mrf.mxu0
        %v1111 = vadd.f32 0.0, %v1110
        %v1112 = vpop.f32.mrf.mxu0
        %1113 = vdwg.mxu0
        %v1114 = vmul.f32 %v1076, 0.5
        %v1115 = vmul.f32 %v1081, 0.5
        %v1116 = vmul.f32 %v1086, 0.5
        %v1117 = vmul.f32 %v1091, 0.5
        %v1118 = vmul.f32 %v1096, 0.5
        %v1119 = vmul.f32 %v1101, 0.5
        %v1120 = vmul.f32 %v1106, 0.5
        %v1121 = vmul.f32 %v1111, 0.5
        %vm1122 = vcmask 523264
        %1123 = vst.msk [vmem:[%s627] sm:$0xff] %vm1122, %v1114
        %1124 = vst.msk [vmem:[%s627 + $0x8] sm:$0xff] %vm1122, %v1115
        %1125 = vst.msk [vmem:[%s627 + $0x10] sm:$0xff] %vm1122, %v1116
        %1126 = vst.msk [vmem:[%s627 + $0x18] sm:$0xff] %vm1122, %v1117
        %1127 = vst.msk [vmem:[%s627 + $0x20] sm:$0xff] %vm1122, %v1118
        %1128 = vst.msk [vmem:[%s627 + $0x28] sm:$0xff] %vm1122, %v1119
        %1129 = vst.msk [vmem:[%s627 + $0x30] sm:$0xff] %vm1122, %v1120
        %1130 = vst.msk [vmem:[%s627 + $0x38] sm:$0xff] %vm1122, %v1121
        %v1131 = vld [vmem:[%s646] sm:$0xff]
        %v1132 = vld [vmem:[%s646 + $0x8] sm:$0xff]
        %v1133 = vld [vmem:[%s646 + $0x10] sm:$0xff]
        %v1134 = vld [vmem:[%s646 + $0x18] sm:$0xff]
        %vm1135 = vcmask 261120
        %v1137 = vsel %vm1135, %v691, 0
        %1139 = vmatprep.subr.mxu0 0.0
        %1140 = vmatpush1.msra.mxu0 0.0
        %1141 = vmatprep.subr.mxu0 0.0
        %1142 = vmatpush1.msra.mxu0 0.0
        %1143 = vmatprep.subr.mxu0 0.0
        %1144 = vmatpush1.msra.mxu0 0.0
        %1145 = vmatprep.subr.mxu0 0.0
        %1146 = vmatpush1.msra.mxu0 0.0
        %1147 = vmatprep.subr.mxu0 0.0
        %1148 = vmatpush1.msra.mxu0 0.0
        %1149 = vmatprep.subr.mxu0 0.0
        %1150 = vmatpush1.msra.mxu0 0.0
        %1151 = vmatprep.subr.mxu0 0.0
        %1152 = vmatpush1.msra.mxu0 0.0
        %1153 = vmatprep.subr.mxu0 0.0
        %1154 = vmatpush1.msra.mxu0 0.0
        %1155 = vmatprep.subr.mxu0 0.0
        %1156 = vmatpush1.msra.mxu0 0.0
        %1157 = vmatprep.subr.mxu0 0.0
        %1158 = vmatpush1.msra.mxu0 0.0
        %1159 = vmatprep.subr.mxu0 0.0
        %1160 = vmatpush1.msra.mxu0 0.0
        %1161 = vmatprep.subr.mxu0 0.0
        %1162 = vmatpush1.msra.mxu0 0.0
        %1163 = vmatprep.subr.mxu0 0.0
        %1164 = vmatpush1.msra.mxu0 %v1134
        %1165 = vmatprep.subr.mxu0 0.0
        %1166 = vmatpush1.msra.mxu0 %v1133
        %1167 = vmatprep.subr.mxu0 0.0
        %1168 = vmatpush1.msra.mxu0 %v1132
        %1169 = vmatprep.subr.mxu0 0.0
        %1170 = vmatpush1.msra.mxu0 %v1131
        %1171 = vmatprep.subr.mxu0 0.0
        %1172 = vmatpush2.msra.mxu0 0.0
        %1173 = vmatprep.subr.mxu0 0.0
        %1174 = vmatpush2.msra.mxu0 0.0
        %1175 = vmatprep.subr.mxu0 0.0
        %1176 = vmatpush2.msra.mxu0 0.0
        %1177 = vmatprep.subr.mxu0 0.0
        %1178 = vmatpush2.msra.mxu0 0.0
        %1179 = vmatprep.subr.mxu0 0.0
        %1180 = vmatpush2.msra.mxu0 0.0
        %1181 = vmatprep.subr.mxu0 0.0
        %1182 = vmatpush2.msra.mxu0 0.0
        %1183 = vmatprep.subr.mxu0 0.0
        %1184 = vmatpush2.msra.mxu0 0.0
        %1185 = vmatprep.subr.mxu0 0.0
        %1186 = vmatpush2.msra.mxu0 0.0
        %1187 = vmatprep.subr.mxu0 0.0
        %1188 = vmatpush2.msra.mxu0 0.0
        %1189 = vmatprep.subr.mxu0 0.0
        %1190 = vmatpush2.msra.mxu0 0.0
        %1191 = vmatprep.subr.mxu0 0.0
        %1192 = vmatpush2.msra.mxu0 0.0
        %1193 = vmatprep.subr.mxu0 0.0
        %1194 = vmatpush2.msra.mxu0 0.0
        %1195 = vmatprep.subr.mxu0 0.0
        %1196 = vmatpush2.msra.mxu0 0.0
        %1197 = vmatprep.subr.mxu0 0.0
        %1198 = vmatpush2.msra.mxu0 0.0
        %1199 = vmatprep.subr.mxu0 0.0
        %1200 = vmatpush2.msra.mxu0 0.0
        %1201 = vmatprep.subr.mxu0 0.0
        %1202 = vmatpush2.msra.mxu0 0.0
        %1203 = vmatprep.mubr.f32.mxu0 0.0
        %1204 = vmatmul.mubr.f32.gmra.mxu0 %v1137
        %v1205 = vpop.f32.mrf.mxu0
        %v1206 = vadd.f32 0.0, %v1205
        %v1207 = vpop.f32.mrf.mxu0
        %1208 = vdwg.mxu0
        %v1209 = vsel %vm711, %v1206, 0.0
        %1210 = vadd.xlane.f32.xlu0 %v1209
        %v1211 = vpop.xlane.xlu0 %1210
        %v1212 = vrot.slane %v1211, 4
        %v1213 = vadd.f32 %v1211, %v1212
        %v1214 = vrot.slane %v1213, 2
        %v1215 = vadd.f32 %v1213, %v1214
        %v1216 = vrot.slane %v1215, 1
        %v1217 = vadd.f32 %v1215, %v1216
        %v1218 = vrcp.pop 32.0
        %v1219 = vmul.f32 %v1217, %v1218
        %v1220 = vsub.f32 %v1206, %v1219
        %v1221 = vmul.f32 %v1220, %v1220
        %v1222 = vsel %vm711, %v1221, 0.0
        %1223 = vadd.xlane.f32.xlu0 %v1222
        %v1224 = vpop.xlane.xlu0 %1223
        %v1225 = vrot.slane %v1224, 4
        %v1226 = vadd.f32 %v1224, %v1225
        %v1227 = vrot.slane %v1226, 2
        %v1228 = vadd.f32 %v1226, %v1227
        %v1229 = vrot.slane %v1228, 1
        %v1230 = vadd.f32 %v1228, %v1229
        %v1231 = vmul.f32 %v1230, %v1218
        %v1232 = vadd.f32 %v1231, 1e-05
        %v1233 = vrsqrt.pop %v1232
        %v1234 = vmul.f32 %v1220, %v1233
        %v1235 = vld [vmem:[%s649] sm:$0x1]
        %v1237 = vlaneseq
        %v1238 = vshrl.u32 %v1237, 7
        %v1239 = vsub.s32 0, %v1238
        %v1240 = vrot.slane %v1235, %v1239
        %v1242 = vmul.f32 %v1234, %v1240
        %v1243 = vld [vmem:[%s652] sm:$0x1]
        %v1245 = vlaneseq
        %v1246 = vshrl.u32 %v1245, 7
        %v1247 = vsub.s32 0, %v1246
        %v1248 = vrot.slane %v1243, %v1247
        %v1250 = vadd.f32 %v1242, %v1248
        %v1251 = vmul.f32 %v1250, %v1250
        %v1252 = vsel %vm711, %v1251, 0.0
        %1253 = vadd.xlane.f32.xlu0 %v1252
        %v1254 = vpop.xlane.xlu0 %1253
        %v1255 = vmul.f32 %v692, %v692
        %v1256 = vmul.f32 %v693, %v693
        %v1257 = vmul.f32 %v694, %v694
        %v1258 = vmul.f32 %v695, %v695
        %v1259 = vmul.f32 %v696, %v696
        %v1260 = vmul.f32 %v697, %v697
        %v1261 = vmul.f32 %v698, %v698
        %v1262 = vmul.f32 %v699, %v699
        %v1263 = vsel %vm711, %v1255, 0.0
        %1264 = vadd.xlane.f32.xlu0 %v1263
        %v1265 = vpop.xlane.xlu0 %1264
        %v1266 = vsel %vm711, %v1256, 0.0
        %1267 = vadd.xlane.f32.xlu0 %v1266
        %v1268 = vpop.xlane.xlu0 %1267
        %v1269 = vsel %vm711, %v1257, 0.0
        %1270 = vadd.xlane.f32.xlu0 %v1269
        %v1271 = vpop.xlane.xlu0 %1270
        %v1272 = vsel %vm711, %v1258, 0.0
        %1273 = vadd.xlane.f32.xlu0 %v1272
        %v1274 = vpop.xlane.xlu0 %1273
        %v1275 = vsel %vm711, %v1259, 0.0
        %1276 = vadd.xlane.f32.xlu0 %v1275
        %v1277 = vpop.xlane.xlu0 %1276
        %v1278 = vsel %vm711, %v1260, 0.0
        %1279 = vadd.xlane.f32.xlu0 %v1278
        %v1280 = vpop.xlane.xlu0 %1279
        %v1281 = vsel %vm711, %v1261, 0.0
        %1282 = vadd.xlane.f32.xlu0 %v1281
        %v1283 = vpop.xlane.xlu0 %1282
        %v1284 = vsel %vm711, %v1262, 0.0
        %1285 = vadd.xlane.f32.xlu0 %v1284
        %v1286 = vpop.xlane.xlu0 %1285
        %v1288 = vsel %vm711, %v1250, 0
        %1290 = vmatprep.subr.mxu0 0.0
        %1291 = vmatpush1.xpose.msra.mxu0 0.0
        %1292 = vmatprep.subr.mxu0 0.0
        %1293 = vmatpush1.xpose.msra.mxu0 0.0
        %1294 = vmatprep.subr.mxu0 0.0
        %1295 = vmatpush1.xpose.msra.mxu0 0.0
        %1296 = vmatprep.subr.mxu0 0.0
        %1297 = vmatpush1.xpose.msra.mxu0 0.0
        %1298 = vmatprep.subr.mxu0 0.0
        %1299 = vmatpush1.xpose.msra.mxu0 0.0
        %1300 = vmatprep.subr.mxu0 0.0
        %1301 = vmatpush1.xpose.msra.mxu0 0.0
        %1302 = vmatprep.subr.mxu0 0.0
        %1303 = vmatpush1.xpose.msra.mxu0 0.0
        %1304 = vmatprep.subr.mxu0 0.0
        %1305 = vmatpush1.xpose.msra.mxu0 0.0
        %1306 = vmatprep.subr.mxu0 0.0
        %1307 = vmatpush1.xpose.msra.mxu0 %v734
        %1308 = vmatprep.subr.mxu0 0.0
        %1309 = vmatpush1.xpose.msra.mxu0 %v731
        %1310 = vmatprep.subr.mxu0 0.0
        %1311 = vmatpush1.xpose.msra.mxu0 %v728
        %1312 = vmatprep.subr.mxu0 0.0
        %1313 = vmatpush1.xpose.msra.mxu0 %v725
        %1314 = vmatprep.subr.mxu0 0.0
        %1315 = vmatpush1.xpose.msra.mxu0 %v722
        %1316 = vmatprep.subr.mxu0 0.0
        %1317 = vmatpush1.xpose.msra.mxu0 %v719
        %1318 = vmatprep.subr.mxu0 0.0
        %1319 = vmatpush1.xpose.msra.mxu0 %v716
        %1320 = vmatprep.subr.mxu0 0.0
        %1321 = vmatpush1.xpose.msra.mxu0 %v713
        %1322 = vmatprep.subr.mxu0 0.0
        %1323 = vmatpush2.xpose.msra.mxu0 0.0
        %1324 = vmatprep.subr.mxu0 0.0
        %1325 = vmatpush2.xpose.msra.mxu0 0.0
        %1326 = vmatprep.subr.mxu0 0.0
        %1327 = vmatpush2.xpose.msra.mxu0 0.0
        %1328 = vmatprep.subr.mxu0 0.0
        %1329 = vmatpush2.xpose.msra.mxu0 0.0
        %1330 = vmatprep.subr.mxu0 0.0
        %1331 = vmatpush2.xpose.msra.mxu0 0.0
        %1332 = vmatprep.subr.mxu0 0.0
        %1333 = vmatpush2.xpose.msra.mxu0 0.0
        %1334 = vmatprep.subr.mxu0 0.0
        %1335 = vmatpush2.xpose.msra.mxu0 0.0
        %1336 = vmatprep.subr.mxu0 0.0
        %1337 = vmatpush2.xpose.msra.mxu0 0.0
        %1338 = vmatprep.subr.mxu0 0.0
        %1339 = vmatpush2.xpose.msra.mxu0 0.0
        %1340 = vmatprep.subr.mxu0 0.0
        %1341 = vmatpush2.xpose.msra.mxu0 0.0
        %1342 = vmatprep.subr.mxu0 0.0
        %1343 = vmatpush2.xpose.msra.mxu0 0.0
        %1344 = vmatprep.subr.mxu0 0.0
        %1345 = vmatpush2.xpose.msra.mxu0 0.0
        %1346 = vmatprep.subr.mxu0 0.0
        %1347 = vmatpush2.xpose.msra.mxu0 0.0
        %1348 = vmatprep.subr.mxu0 0.0
        %1349 = vmatpush2.xpose.msra.mxu0 0.0
        %1350 = vmatprep.subr.mxu0 0.0
        %1351 = vmatpush2.xpose.msra.mxu0 0.0
        %1352 = vmatprep.subr.mxu0 0.0
        %1353 = vmatpush2.xpose.msra.mxu0 0.0
        %1354 = vmatprep.mubr.f32.mxu0 0.0
        %1355 = vmatmul.mubr.f32.gmra.mxu0 %v1288
        %v1356 = vpop.f32.mrf.mxu0
        %v1357 = vadd.f32 0.0, %v1356
        %v1358 = vpop.f32.mrf.mxu0
        %1359 = vdwg.mxu0
        %v1368 = vlaneseq
        %v1369 = vand.u32 %v1368, 127
        %v1370 = vlaneseq
        %v1371 = vshrl.u32 %v1370, 7
        %v1372 = vsub.s32 %v1369, %v1371
        %v1373 = vrot.slane %v1265, %v1372
        %v1374 = vadd.s32 %v1369, 4294967288
        %v1375 = vlaneseq
        %v1376 = vshrl.u32 %v1375, 7
        %v1377 = vsub.s32 %v1374, %v1376
        %v1378 = vrot.slane %v1268, %v1377
        %vm1379 = vcmask 130112
        %v1380 = vsel %vm1379, %v1378, %v1373
        %v1381 = vadd.s32 %v1369, 4294967280
        %v1382 = vlaneseq
        %v1383 = vshrl.u32 %v1382, 7
        %v1384 = vsub.s32 %v1381, %v1383
        %v1385 = vrot.slane %v1271, %v1384
        %vm1386 = vcmask 195712
        %v1387 = vsel %vm1386, %v1385, %v1380
        %v1388 = vadd.s32 %v1369, 4294967272
        %v1389 = vlaneseq
        %v1390 = vshrl.u32 %v1389, 7
        %v1391 = vsub.s32 %v1388, %v1390
        %v1392 = vrot.slane %v1274, %v1391
        %vm1393 = vcmask 261312
        %v1394 = vsel %vm1393, %v1392, %v1387
        %v1395 = vadd.s32 %v1369, 4294967264
        %v1396 = vlaneseq
        %v1397 = vshrl.u32 %v1396, 7
        %v1398 = vsub.s32 %v1395, %v1397
        %v1399 = vrot.slane %v1277, %v1398
        %vm1400 = vcmask 326912
        %v1401 = vsel %vm1400, %v1399, %v1394
        %v1402 = vadd.s32 %v1369, 4294967256
        %v1403 = vlaneseq
        %v1404 = vshrl.u32 %v1403, 7
        %v1405 = vsub.s32 %v1402, %v1404
        %v1406 = vrot.slane %v1280, %v1405
        %vm1407 = vcmask 392512
        %v1408 = vsel %vm1407, %v1406, %v1401
        %v1409 = vadd.s32 %v1369, 4294967248
        %v1410 = vlaneseq
        %v1411 = vshrl.u32 %v1410, 7
        %v1412 = vsub.s32 %v1409, %v1411
        %v1413 = vrot.slane %v1283, %v1412
        %vm1414 = vcmask 458112
        %v1415 = vsel %vm1414, %v1413, %v1408
        %v1416 = vadd.s32 %v1369, 4294967240
        %v1417 = vlaneseq
        %v1418 = vshrl.u32 %v1417, 7
        %v1419 = vsub.s32 %v1416, %v1418
        %v1420 = vrot.slane %v1286, %v1419
        %vm1421 = vcmask 523712
        %v1422 = vsel %vm1421, %v1420, %v1415
        %vm1423 = vcmask 1042434
        %v1424 = vsel %vm1423, %v1422, %v1422
        %vm1425 = vcmask 1043459
        %v1426 = vsel %vm1425, %v1422, %v1424
        %vm1427 = vcmask 1044484
        %v1428 = vsel %vm1427, %v1422, %v1426
        %vm1429 = vcmask 1045509
        %v1430 = vsel %vm1429, %v1422, %v1428
        %vm1431 = vcmask 1046534
        %v1432 = vsel %vm1431, %v1422, %v1430
        %vm1433 = vcmask 1047559
        %v1434 = vsel %vm1433, %v1422, %v1432
        %v1436 = vadd.f32 %v1254, %v1434
        %v1437 = vmul.f32 %v1357, 2.0
        %v1438 = vsub.f32 %v1436, %v1437
        %v1439 = vmax.f32 %v1438, 0.0
        %v1440 = vsel %vm1122, %v1439, inf
        %1441 = vmin.xlane.f32.xlu0 %v1440
        %v1442 = vpop.xlane.xlu0 %1441
        %vm1443 = vcmp.eq.f32.partialorder %v1439, %v1442
        %v1444 = vsel %vm1443, %v1369, 64
        %v1445 = vsel %vm1122, %v1444, 2147483647
        %v1446 = vand.u32 %v1445, 65535
        %v1447 = vshra.s32 %v1445, 16
        %v1448 = vcvt.s32.f32 %v1446
        %v1449 = vcvt.s32.f32 %v1447
        %1450 = vmin.xlane.f32.xlu0 %v1449
        %v1451 = vpop.xlane.xlu0 %1450
        %vm1452 = vcmp.eq.f32.partialorder %v1449, %v1451
        %v1453 = vsel %vm1452, %v1448, inf
        %1454 = vmin.xlane.f32.xlu0 %v1453
        %v1455 = vpop.xlane.xlu0 %1454
        %v1456 = vcvt.f32.s32 %v1455
        %v1457 = vcvt.f32.s32 %v1451
        %v1458 = vshll.u32 %v1457, 16
        %v1459 = vadd.s32 %v1458, %v1456
        %vm1460 = vcmask 7168
        %1461 = vst.msk [vmem:[%s676] sm:$0xff] %vm1460, %v1459
        %vm1462 = vcmp.eq.s32.totalorder %v1369, %v1459
        %v1463 = vsel %vm1462, 1, 0
        %v1464 = vcvt.s32.f32 %v1463
        %v1466 = vsel %vm1122, %v1464, 0
        %1468 = vmatprep.subr.mxu0 0.0
        %1469 = vmatpush1.msra.mxu0 0.0
        %1470 = vmatprep.subr.mxu0 0.0
        %1471 = vmatpush1.msra.mxu0 0.0
        %1472 = vmatprep.subr.mxu0 0.0
        %1473 = vmatpush1.msra.mxu0 0.0
        %1474 = vmatprep.subr.mxu0 0.0
        %1475 = vmatpush1.msra.mxu0 0.0
        %1476 = vmatprep.subr.mxu0 0.0
        %1477 = vmatpush1.msra.mxu0 0.0
        %1478 = vmatprep.subr.mxu0 0.0
        %1479 = vmatpush1.msra.mxu0 0.0
        %1480 = vmatprep.subr.mxu0 0.0
        %1481 = vmatpush1.msra.mxu0 0.0
        %1482 = vmatprep.subr.mxu0 0.0
        %1483 = vmatpush1.msra.mxu0 0.0
        %1484 = vmatprep.subr.mxu0 0.0
        %1485 = vmatpush1.msra.mxu0 %v699
        %1486 = vmatprep.subr.mxu0 0.0
        %1487 = vmatpush1.msra.mxu0 %v698
        %1488 = vmatprep.subr.mxu0 0.0
        %1489 = vmatpush1.msra.mxu0 %v697
        %1490 = vmatprep.subr.mxu0 0.0
        %1491 = vmatpush1.msra.mxu0 %v696
        %1492 = vmatprep.subr.mxu0 0.0
        %1493 = vmatpush1.msra.mxu0 %v695
        %1494 = vmatprep.subr.mxu0 0.0
        %1495 = vmatpush1.msra.mxu0 %v694
        %1496 = vmatprep.subr.mxu0 0.0
        %1497 = vmatpush1.msra.mxu0 %v693
        %1498 = vmatprep.subr.mxu0 0.0
        %1499 = vmatpush1.msra.mxu0 %v692
        %1500 = vmatprep.subr.mxu0 0.0
        %1501 = vmatpush2.msra.mxu0 0.0
        %1502 = vmatprep.subr.mxu0 0.0
        %1503 = vmatpush2.msra.mxu0 0.0
        %1504 = vmatprep.subr.mxu0 0.0
        %1505 = vmatpush2.msra.mxu0 0.0
        %1506 = vmatprep.subr.mxu0 0.0
        %1507 = vmatpush2.msra.mxu0 0.0
        %1508 = vmatprep.subr.mxu0 0.0
        %1509 = vmatpush2.msra.mxu0 0.0
        %1510 = vmatprep.subr.mxu0 0.0
        %1511 = vmatpush2.msra.mxu0 0.0
        %1512 = vmatprep.subr.mxu0 0.0
        %1513 = vmatpush2.msra.mxu0 0.0
        %1514 = vmatprep.subr.mxu0 0.0
        %1515 = vmatpush2.msra.mxu0 0.0
        %1516 = vmatprep.subr.mxu0 0.0
        %1517 = vmatpush2.msra.mxu0 0.0
        %1518 = vmatprep.subr.mxu0 0.0
        %1519 = vmatpush2.msra.mxu0 0.0
        %1520 = vmatprep.subr.mxu0 0.0
        %1521 = vmatpush2.msra.mxu0 0.0
        %1522 = vmatprep.subr.mxu0 0.0
        %1523 = vmatpush2.msra.mxu0 0.0
        %1524 = vmatprep.subr.mxu0 0.0
        %1525 = vmatpush2.msra.mxu0 0.0
        %1526 = vmatprep.subr.mxu0 0.0
        %1527 = vmatpush2.msra.mxu0 0.0
        %1528 = vmatprep.subr.mxu0 0.0
        %1529 = vmatpush2.msra.mxu0 0.0
        %1530 = vmatprep.subr.mxu0 0.0
        %1531 = vmatpush2.msra.mxu0 0.0
        %1532 = vmatprep.mubr.f32.mxu0 0.0
        %1533 = vmatmul.mubr.f32.gmra.mxu0 %v1466
        %v1534 = vpop.f32.mrf.mxu0
        %v1535 = vadd.f32 0.0, %v1534
        %v1536 = vpop.f32.mrf.mxu0
        %1537 = vdwg.mxu0
        %v1538 = vld [vmem:[#allocation2] sm:$0x1]
        %v1539 = vsub.f32 %v1535, %v1250
        %v1540 = vmul.f32 %v1539, %v1539
        %v1541 = vsel %vm711, %v1540, 0.0
        %1542 = vadd.xlane.f32.xlu0 %v1541
        %v1543 = vpop.xlane.xlu0 %1542
        %v1544 = vrot.slane %v1543, 4
        %v1545 = vadd.f32 %v1543, %v1544
        %v1546 = vrot.slane %v1545, 2
        %v1547 = vadd.f32 %v1545, %v1546
        %v1548 = vrot.slane %v1547, 1
        %v1549 = vadd.f32 %v1547, %v1548
        %s1550 = vtos %v1549
        %v1551 = vstv %s1550
        %v1552 = vadd.f32 %v1538, %v1551
        %vm1553 = vcmask 0
        %1554 = vst.msk [vmem:[#allocation2] sm:$0x1] %vm1553, %v1552
        %v1555 = vld [vmem:[#allocation3] sm:$0x1]
        %v1556 = vsel %vm1122, %v1464, 0.0
        %v1557 = vrot.slane %v1556, 4
        %v1558 = vadd.f32 %v1556, %v1557
        %v1559 = vrot.slane %v1558, 2
        %v1560 = vadd.f32 %v1558, %v1559
        %v1561 = vrot.slane %v1560, 1
        %v1562 = vadd.f32 %v1560, %v1561
        %v1563 = vadd.f32 %v1555, %v1562
        %vm1564 = vcmask 516096
        %1565 = vst.msk [vmem:[#allocation3] sm:$0x1] %vm1564, %v1563
        %v1566 = vrsqrt.pop %v1439
        %v1567 = vmul.f32 %v1439, %v1566
        %vm1568 = vcmp.eq.f32.partialorder %v1439, inf
        %v1569 = vsel %vm1568, %v1439, %v1567
        %vm1570 = vcmp.eq.f32.partialorder %v1439, 0.0
        %v1571 = vand.u32 %v1439, 2147483648
        %v1572 = vsel %vm1570, %v1571, %v1569
        %v1573 = vsub.f32 0.0, %v1572
        %v1575 = vlaneseq
        %v1576 = vshrl.u32 %v1575, 7
        %v1577 = vsub.s32 0, %v1576
        %v1578 = vrot.slane %v702, %v1577
        %1579 = vset.pattern.permute.xlu0 0
        %1580 = vperm.xlu0 %1579, %v1578
        %v1581 = vpop.permute.xlu0 %1580
        %v1583 = vmul.f32 %v1573, %v1581
        %v1584 = vsel %vm1122, %v1583, -inf
        %1585 = vmax.xlane.f32.xlu0 %v1584
        %v1586 = vpop.xlane.xlu0 %1585
        %v1587 = vsub.f32 %v1583, %v1586
        %v1588 = vmul.f32 %v1587, 1.442695
        %v1589 = vpow.pop %v1588
        %v1590 = vsel %vm1122, %v1589, 0.0
        %1591 = vadd.xlane.f32.xlu0 %v1590
        %v1592 = vpop.xlane.xlu0 %1591
        %v1593 = vrcp.pop %v1592
        %v1594 = vmul.f32 %v1589, %v1593
        %v1595 = vrot.slane %v1584, 4
        %v1596 = vmax.f32 %v1584, %v1595
        %v1597 = vrot.slane %v1596, 2
        %v1598 = vmax.f32 %v1596, %v1597
        %v1599 = vrot.slane %v1598, 1
        %v1600 = vmax.f32 %v1598, %v1599
        %v1601 = vsub.f32 %v1583, %v1600
        %v1602 = vmul.f32 %v1601, 1.442695
        %v1603 = vpow.pop %v1602
        %v1604 = vsel %vm1122, %v1603, 0.0
        %v1605 = vrot.slane %v1604, 4
        %v1606 = vadd.f32 %v1604, %v1605
        %v1607 = vrot.slane %v1606, 2
        %v1608 = vadd.f32 %v1606, %v1607
        %v1609 = vrot.slane %v1608, 1
        %v1610 = vadd.f32 %v1608, %v1609
        %v1611 = vrcp.pop %v1610
        %v1612 = vmul.f32 %v1603, %v1611
        %1613 = vxpose.xlu0.b32.start [1/16] %v1612, 128
        %1614 = vxpose.xlu0.b32.cont [2/16] 0.0, 128
        %1615 = vxpose.xlu0.b32.cont [3/16] 0.0, 128
        %1616 = vxpose.xlu0.b32.cont [4/16] 0.0, 128
        %1617 = vxpose.xlu0.b32.cont [5/16] 0.0, 128
        %1618 = vxpose.xlu0.b32.cont [6/16] 0.0, 128
        %1619 = vxpose.xlu0.b32.cont [7/16] 0.0, 128
        %1620 = vxpose.xlu0.b32.cont [8/16] 0.0, 128
        %1621 = vxpose.xlu0.b32.cont [9/16] 0.0, 128
        %1622 = vxpose.xlu0.b32.cont [10/16] 0.0, 128
        %1623 = vxpose.xlu0.b32.cont [11/16] 0.0, 128
        %1624 = vxpose.xlu0.b32.cont [12/16] 0.0, 128
        %1625 = vxpose.xlu0.b32.cont [13/16] 0.0, 128
        %1626 = vxpose.xlu0.b32.cont [14/16] 0.0, 128
        %1627 = vxpose.xlu0.b32.cont [15/16] 0.0, 128
        %1628 = vxpose.xlu0.b32.end [16/16] 0.0, 128
        %v1629 = vpop.trf.xlu0
        %v1630 = vpop.trf.xlu0
        %v1631 = vpop.trf.xlu0
        %v1632 = vpop.trf.xlu0
        %v1633 = vpop.trf.xlu0
        %v1634 = vpop.trf.xlu0
        %v1635 = vpop.trf.xlu0
        %v1636 = vpop.trf.xlu0
        %v1637 = vpop.trf.xlu0
        %v1638 = vpop.trf.xlu0
        %v1639 = vpop.trf.xlu0
        %v1640 = vpop.trf.xlu0
        %v1641 = vpop.trf.xlu0
        %v1642 = vpop.trf.xlu0
        %v1643 = vpop.trf.xlu0
        %v1644 = vpop.trf.xlu0
        %vm1645 = vcmask 64512
        %v1647 = vsel %vm1645, %v1629, 0
        %v1650 = vsel %vm1645, %v1630, 0
        %v1653 = vsel %vm1645, %v1631, 0
        %v1656 = vsel %vm1645, %v1632, 0
        %v1659 = vsel %vm1645, %v1633, 0
        %v1662 = vsel %vm1645, %v1634, 0
        %v1665 = vsel %vm1645, %v1635, 0
        %v1668 = vsel %vm1645, %v1636, 0
        %1670 = vmatprep.subr.mxu0 0.0
        %1671 = vmatpush1.msra.mxu0 0.0
        %1672 = vmatprep.subr.mxu0 0.0
        %1673 = vmatpush1.msra.mxu0 0.0
        %1674 = vmatprep.subr.mxu0 0.0
        %1675 = vmatpush1.msra.mxu0 0.0
        %1676 = vmatprep.subr.mxu0 0.0
        %1677 = vmatpush1.msra.mxu0 0.0
        %1678 = vmatprep.subr.mxu0 0.0
        %1679 = vmatpush1.msra.mxu0 0.0
        %1680 = vmatprep.subr.mxu0 0.0
        %1681 = vmatpush1.msra.mxu0 0.0
        %1682 = vmatprep.subr.mxu0 0.0
        %1683 = vmatpush1.msra.mxu0 0.0
        %1684 = vmatprep.subr.mxu0 0.0
        %1685 = vmatpush1.msra.mxu0 0.0
        %1686 = vmatprep.subr.mxu0 0.0
        %1687 = vmatpush1.msra.mxu0 0.0
        %1688 = vmatprep.subr.mxu0 0.0
        %1689 = vmatpush1.msra.mxu0 0.0
        %1690 = vmatprep.subr.mxu0 0.0
        %1691 = vmatpush1.msra.mxu0 0.0
        %1692 = vmatprep.subr.mxu0 0.0
        %1693 = vmatpush1.msra.mxu0 0.0
        %1694 = vmatprep.subr.mxu0 0.0
        %1695 = vmatpush1.msra.mxu0 0.0
        %1696 = vmatprep.subr.mxu0 0.0
        %1697 = vmatpush1.msra.mxu0 0.0
        %1698 = vmatprep.subr.mxu0 0.0
        %1699 = vmatpush1.msra.mxu0 0.0
        %1700 = vmatprep.subr.mxu0 0.0
        %1701 = vmatpush1.msra.mxu0 %v691
        %1702 = vmatprep.subr.mxu0 0.0
        %1703 = vmatpush2.msra.mxu0 0.0
        %1704 = vmatprep.subr.mxu0 0.0
        %1705 = vmatpush2.msra.mxu0 0.0
        %1706 = vmatprep.subr.mxu0 0.0
        %1707 = vmatpush2.msra.mxu0 0.0
        %1708 = vmatprep.subr.mxu0 0.0
        %1709 = vmatpush2.msra.mxu0 0.0
        %1710 = vmatprep.subr.mxu0 0.0
        %1711 = vmatpush2.msra.mxu0 0.0
        %1712 = vmatprep.subr.mxu0 0.0
        %1713 = vmatpush2.msra.mxu0 0.0
        %1714 = vmatprep.subr.mxu0 0.0
        %1715 = vmatpush2.msra.mxu0 0.0
        %1716 = vmatprep.subr.mxu0 0.0
        %1717 = vmatpush2.msra.mxu0 0.0
        %1718 = vmatprep.subr.mxu0 0.0
        %1719 = vmatpush2.msra.mxu0 0.0
        %1720 = vmatprep.subr.mxu0 0.0
        %1721 = vmatpush2.msra.mxu0 0.0
        %1722 = vmatprep.subr.mxu0 0.0
        %1723 = vmatpush2.msra.mxu0 0.0
        %1724 = vmatprep.subr.mxu0 0.0
        %1725 = vmatpush2.msra.mxu0 0.0
        %1726 = vmatprep.subr.mxu0 0.0
        %1727 = vmatpush2.msra.mxu0 0.0
        %1728 = vmatprep.subr.mxu0 0.0
        %1729 = vmatpush2.msra.mxu0 0.0
        %1730 = vmatprep.subr.mxu0 0.0
        %1731 = vmatpush2.msra.mxu0 0.0
        %1732 = vmatprep.subr.mxu0 0.0
        %1733 = vmatpush2.msra.mxu0 0.0
        %1734 = vmatprep.mubr.f32.mxu0 0.0
        %1735 = vmatmul.mubr.f32.gmra.mxu0 %v1647
        %v1736 = vpop.f32.mrf.mxu0
        %v1737 = vadd.f32 0.0, %v1736
        %v1738 = vpop.f32.mrf.mxu0
        %1739 = vmatprep.mubr.f32.mxu0 0.0
        %1740 = vmatmul.mubr.f32.gmra.mxu0 %v1650
        %v1741 = vpop.f32.mrf.mxu0
        %v1742 = vadd.f32 0.0, %v1741
        %v1743 = vpop.f32.mrf.mxu0
        %1744 = vmatprep.mubr.f32.mxu0 0.0
        %1745 = vmatmul.mubr.f32.gmra.mxu0 %v1653
        %v1746 = vpop.f32.mrf.mxu0
        %v1747 = vadd.f32 0.0, %v1746
        %v1748 = vpop.f32.mrf.mxu0
        %1749 = vmatprep.mubr.f32.mxu0 0.0
        %1750 = vmatmul.mubr.f32.gmra.mxu0 %v1656
        %v1751 = vpop.f32.mrf.mxu0
        %v1752 = vadd.f32 0.0, %v1751
        %v1753 = vpop.f32.mrf.mxu0
        %1754 = vmatprep.mubr.f32.mxu0 0.0
        %1755 = vmatmul.mubr.f32.gmra.mxu0 %v1659
        %v1756 = vpop.f32.mrf.mxu0
        %v1757 = vadd.f32 0.0, %v1756
        %v1758 = vpop.f32.mrf.mxu0
        %1759 = vmatprep.mubr.f32.mxu0 0.0
        %1760 = vmatmul.mubr.f32.gmra.mxu0 %v1662
        %v1761 = vpop.f32.mrf.mxu0
        %v1762 = vadd.f32 0.0, %v1761
        %v1763 = vpop.f32.mrf.mxu0
        %1764 = vmatprep.mubr.f32.mxu0 0.0
        %1765 = vmatmul.mubr.f32.gmra.mxu0 %v1665
        %v1766 = vpop.f32.mrf.mxu0
        %v1767 = vadd.f32 0.0, %v1766
        %v1768 = vpop.f32.mrf.mxu0
        %1769 = vmatprep.mubr.f32.mxu0 0.0
        %1770 = vmatmul.mubr.f32.gmra.mxu0 %v1668
        %v1771 = vpop.f32.mrf.mxu0
        %v1772 = vadd.f32 0.0, %v1771
        %v1773 = vpop.f32.mrf.mxu0
        %1774 = vdwg.mxu0
        %v1775 = vld [vmem:[%s9] sm:$0xff]
        %v1776 = vld [vmem:[%s9 + $0x8] sm:$0xff]
        %v1777 = vld [vmem:[%s9 + $0x10] sm:$0xff]
        %v1778 = vld [vmem:[%s9 + $0x18] sm:$0xff]
        %v1779 = vld [vmem:[%s10] sm:$0x1]
        %v1781 = vlaneseq
        %v1782 = vshrl.u32 %v1781, 7
        %v1783 = vsub.s32 0, %v1782
        %v1784 = vrot.slane %v1779, %v1783
        %v1787 = vsel %vm1135, %v1737, 0
        %v1790 = vsel %vm1135, %v1742, 0
        %v1793 = vsel %vm1135, %v1747, 0
        %v1796 = vsel %vm1135, %v1752, 0
        %v1799 = vsel %vm1135, %v1757, 0
        %v1802 = vsel %vm1135, %v1762, 0
        %v1805 = vsel %vm1135, %v1767, 0
        %v1808 = vsel %vm1135, %v1772, 0
        %1810 = vmatprep.subr.mxu0 0.0
        %1811 = vmatpush1.msra.mxu0 0.0
        %1812 = vmatprep.subr.mxu0 0.0
        %1813 = vmatpush1.msra.mxu0 0.0
        %1814 = vmatprep.subr.mxu0 0.0
        %1815 = vmatpush1.msra.mxu0 0.0
        %1816 = vmatprep.subr.mxu0 0.0
        %1817 = vmatpush1.msra.mxu0 0.0
        %1818 = vmatprep.subr.mxu0 0.0
        %1819 = vmatpush1.msra.mxu0 0.0
        %1820 = vmatprep.subr.mxu0 0.0
        %1821 = vmatpush1.msra.mxu0 0.0
        %1822 = vmatprep.subr.mxu0 0.0
        %1823 = vmatpush1.msra.mxu0 0.0
        %1824 = vmatprep.subr.mxu0 0.0
        %1825 = vmatpush1.msra.mxu0 0.0
        %1826 = vmatprep.subr.mxu0 0.0
        %1827 = vmatpush1.msra.mxu0 0.0
        %1828 = vmatprep.subr.mxu0 0.0
        %1829 = vmatpush1.msra.mxu0 0.0
        %1830 = vmatprep.subr.mxu0 0.0
        %1831 = vmatpush1.msra.mxu0 0.0
        %1832 = vmatprep.subr.mxu0 0.0
        %1833 = vmatpush1.msra.mxu0 0.0
        %1834 = vmatprep.subr.mxu0 0.0
        %1835 = vmatpush1.msra.mxu0 %v1778
        %1836 = vmatprep.subr.mxu0 0.0
        %1837 = vmatpush1.msra.mxu0 %v1777
        %1838 = vmatprep.subr.mxu0 0.0
        %1839 = vmatpush1.msra.mxu0 %v1776
        %1840 = vmatprep.subr.mxu0 0.0
        %1841 = vmatpush1.msra.mxu0 %v1775
        %1842 = vmatprep.subr.mxu0 0.0
        %1843 = vmatpush2.msra.mxu0 0.0
        %1844 = vmatprep.subr.mxu0 0.0
        %1845 = vmatpush2.msra.mxu0 0.0
        %1846 = vmatprep.subr.mxu0 0.0
        %1847 = vmatpush2.msra.mxu0 0.0
        %1848 = vmatprep.subr.mxu0 0.0
        %1849 = vmatpush2.msra.mxu0 0.0
        %1850 = vmatprep.subr.mxu0 0.0
        %1851 = vmatpush2.msra.mxu0 0.0
        %1852 = vmatprep.subr.mxu0 0.0
        %1853 = vmatpush2.msra.mxu0 0.0
        %1854 = vmatprep.subr.mxu0 0.0
        %1855 = vmatpush2.msra.mxu0 0.0
        %1856 = vmatprep.subr.mxu0 0.0
        %1857 = vmatpush2.msra.mxu0 0.0
        %1858 = vmatprep.subr.mxu0 0.0
        %1859 = vmatpush2.msra.mxu0 0.0
        %1860 = vmatprep.subr.mxu0 0.0
        %1861 = vmatpush2.msra.mxu0 0.0
        %1862 = vmatprep.subr.mxu0 0.0
        %1863 = vmatpush2.msra.mxu0 0.0
        %1864 = vmatprep.subr.mxu0 0.0
        %1865 = vmatpush2.msra.mxu0 0.0
        %1866 = vmatprep.subr.mxu0 0.0
        %1867 = vmatpush2.msra.mxu0 0.0
        %1868 = vmatprep.subr.mxu0 0.0
        %1869 = vmatpush2.msra.mxu0 0.0
        %1870 = vmatprep.subr.mxu0 0.0
        %1871 = vmatpush2.msra.mxu0 0.0
        %1872 = vmatprep.subr.mxu0 0.0
        %1873 = vmatpush2.msra.mxu0 0.0
        %1874 = vmatprep.mubr.f32.mxu0 0.0
        %1875 = vmatmul.mubr.f32.gmra.mxu0 %v1787
        %v1876 = vpop.f32.mrf.mxu0
        %v1877 = vadd.f32 %v1784, %v1876
        %v1878 = vpop.f32.mrf.mxu0
        %1879 = vmatprep.mubr.f32.mxu0 0.0
        %1880 = vmatmul.mubr.f32.gmra.mxu0 %v1790
        %v1881 = vpop.f32.mrf.mxu0
        %v1882 = vadd.f32 %v1784, %v1881
        %v1883 = vpop.f32.mrf.mxu0
        %1884 = vmatprep.mubr.f32.mxu0 0.0
        %1885 = vmatmul.mubr.f32.gmra.mxu0 %v1793
        %v1886 = vpop.f32.mrf.mxu0
        %v1887 = vadd.f32 %v1784, %v1886
        %v1888 = vpop.f32.mrf.mxu0
        %1889 = vmatprep.mubr.f32.mxu0 0.0
        %1890 = vmatmul.mubr.f32.gmra.mxu0 %v1796
        %v1891 = vpop.f32.mrf.mxu0
        %v1892 = vadd.f32 %v1784, %v1891
        %v1893 = vpop.f32.mrf.mxu0
        %1894 = vmatprep.mubr.f32.mxu0 0.0
        %1895 = vmatmul.mubr.f32.gmra.mxu0 %v1799
        %v1896 = vpop.f32.mrf.mxu0
        %v1897 = vadd.f32 %v1784, %v1896
        %v1898 = vpop.f32.mrf.mxu0
        %1899 = vmatprep.mubr.f32.mxu0 0.0
        %1900 = vmatmul.mubr.f32.gmra.mxu0 %v1802
        %v1901 = vpop.f32.mrf.mxu0
        %v1902 = vadd.f32 %v1784, %v1901
        %v1903 = vpop.f32.mrf.mxu0
        %1904 = vmatprep.mubr.f32.mxu0 0.0
        %1905 = vmatmul.mubr.f32.gmra.mxu0 %v1805
        %v1906 = vpop.f32.mrf.mxu0
        %v1907 = vadd.f32 %v1784, %v1906
        %v1908 = vpop.f32.mrf.mxu0
        %1909 = vmatprep.mubr.f32.mxu0 0.0
        %1910 = vmatmul.mubr.f32.gmra.mxu0 %v1808
        %v1911 = vpop.f32.mrf.mxu0
        %v1912 = vadd.f32 %v1784, %v1911
        %v1913 = vpop.f32.mrf.mxu0
        %1914 = vdwg.mxu0
        %v1916 = vsel %vm1122, %v1594, 0
        %1918 = vmatprep.subr.mxu0 0.0
        %1919 = vmatpush1.msra.mxu0 0.0
        %1920 = vmatprep.subr.mxu0 0.0
        %1921 = vmatpush1.msra.mxu0 0.0
        %1922 = vmatprep.subr.mxu0 0.0
        %1923 = vmatpush1.msra.mxu0 0.0
        %1924 = vmatprep.subr.mxu0 0.0
        %1925 = vmatpush1.msra.mxu0 0.0
        %1926 = vmatprep.subr.mxu0 0.0
        %1927 = vmatpush1.msra.mxu0 0.0
        %1928 = vmatprep.subr.mxu0 0.0
        %1929 = vmatpush1.msra.mxu0 0.0
        %1930 = vmatprep.subr.mxu0 0.0
        %1931 = vmatpush1.msra.mxu0 0.0
        %1932 = vmatprep.subr.mxu0 0.0
        %1933 = vmatpush1.msra.mxu0 0.0
        %1934 = vmatprep.subr.mxu0 0.0
        %1935 = vmatpush1.msra.mxu0 %v1121
        %1936 = vmatprep.subr.mxu0 0.0
        %1937 = vmatpush1.msra.mxu0 %v1120
        %1938 = vmatprep.subr.mxu0 0.0
        %1939 = vmatpush1.msra.mxu0 %v1119
        %1940 = vmatprep.subr.mxu0 0.0
        %1941 = vmatpush1.msra.mxu0 %v1118
        %1942 = vmatprep.subr.mxu0 0.0
        %1943 = vmatpush1.msra.mxu0 %v1117
        %1944 = vmatprep.subr.mxu0 0.0
        %1945 = vmatpush1.msra.mxu0 %v1116
        %1946 = vmatprep.subr.mxu0 0.0
        %1947 = vmatpush1.msra.mxu0 %v1115
        %1948 = vmatprep.subr.mxu0 0.0
        %1949 = vmatpush1.msra.mxu0 %v1114
        %1950 = vmatprep.subr.mxu0 0.0
        %1951 = vmatpush2.msra.mxu0 0.0
        %1952 = vmatprep.subr.mxu0 0.0
        %1953 = vmatpush2.msra.mxu0 0.0
        %1954 = vmatprep.subr.mxu0 0.0
        %1955 = vmatpush2.msra.mxu0 0.0
        %1956 = vmatprep.subr.mxu0 0.0
        %1957 = vmatpush2.msra.mxu0 0.0
        %1958 = vmatprep.subr.mxu0 0.0
        %1959 = vmatpush2.msra.mxu0 0.0
        %1960 = vmatprep.subr.mxu0 0.0
        %1961 = vmatpush2.msra.mxu0 0.0
        %1962 = vmatprep.subr.mxu0 0.0
        %1963 = vmatpush2.msra.mxu0 0.0
        %1964 = vmatprep.subr.mxu0 0.0
        %1965 = vmatpush2.msra.mxu0 0.0
        %1966 = vmatprep.subr.mxu0 0.0
        %1967 = vmatpush2.msra.mxu0 0.0
        %1968 = vmatprep.subr.mxu0 0.0
        %1969 = vmatpush2.msra.mxu0 0.0
        %1970 = vmatprep.subr.mxu0 0.0
        %1971 = vmatpush2.msra.mxu0 0.0
        %1972 = vmatprep.subr.mxu0 0.0
        %1973 = vmatpush2.msra.mxu0 0.0
        %1974 = vmatprep.subr.mxu0 0.0
        %1975 = vmatpush2.msra.mxu0 0.0
        %1976 = vmatprep.subr.mxu0 0.0
        %1977 = vmatpush2.msra.mxu0 0.0
        %1978 = vmatprep.subr.mxu0 0.0
        %1979 = vmatpush2.msra.mxu0 0.0
        %1980 = vmatprep.subr.mxu0 0.0
        %1981 = vmatpush2.msra.mxu0 0.0
        %1982 = vmatprep.mubr.f32.mxu0 0.0
        %1983 = vmatmul.mubr.f32.gmra.mxu0 %v1916
        %v1984 = vpop.f32.mrf.mxu0
        %v1985 = vadd.f32 0.0, %v1984
        %v1986 = vpop.f32.mrf.mxu0
        %1987 = vdwg.mxu0
        %v1988 = vsel %vm1122, %v1985, -inf
        %1989 = vmax.xlane.f32.xlu0 %v1988
        %v1990 = vpop.xlane.xlu0 %1989
        %v1991 = vsub.f32 %v1985, %v1990
        %v1992 = vmul.f32 %v1991, 1.442695
        %v1993 = vpow.pop %v1992
        %v1994 = vsel %vm1122, %v1993, 0.0
        %1995 = vadd.xlane.f32.xlu0 %v1994
        %v1996 = vpop.xlane.xlu0 %1995
        %v1997 = vrcp.pop %v1996
        %v1998 = vmul.f32 %v1993, %v1997
        %1999 = vst.msk [vmem:[%s668] sm:$0xff] %vm1122, %v1998
        %v2001 = vsel %vm1122, %v1998, 0
        %2003 = vmatprep.subr.mxu0 0.0
        %2004 = vmatpush1.msra.mxu0 0.0
        %2005 = vmatprep.subr.mxu0 0.0
        %2006 = vmatpush1.msra.mxu0 0.0
        %2007 = vmatprep.subr.mxu0 0.0
        %2008 = vmatpush1.msra.mxu0 0.0
        %2009 = vmatprep.subr.mxu0 0.0
        %2010 = vmatpush1.msra.mxu0 0.0
        %2011 = vmatprep.subr.mxu0 0.0
        %2012 = vmatpush1.msra.mxu0 0.0
        %2013 = vmatprep.subr.mxu0 0.0
        %2014 = vmatpush1.msra.mxu0 0.0
        %2015 = vmatprep.subr.mxu0 0.0
        %2016 = vmatpush1.msra.mxu0 0.0
        %2017 = vmatprep.subr.mxu0 0.0
        %2018 = vmatpush1.msra.mxu0 0.0
        %2019 = vmatprep.subr.mxu0 0.0
        %2020 = vmatpush1.msra.mxu0 %v1912
        %2021 = vmatprep.subr.mxu0 0.0
        %2022 = vmatpush1.msra.mxu0 %v1907
        %2023 = vmatprep.subr.mxu0 0.0
        %2024 = vmatpush1.msra.mxu0 %v1902
        %2025 = vmatprep.subr.mxu0 0.0
        %2026 = vmatpush1.msra.mxu0 %v1897
        %2027 = vmatprep.subr.mxu0 0.0
        %2028 = vmatpush1.msra.mxu0 %v1892
        %2029 = vmatprep.subr.mxu0 0.0
        %2030 = vmatpush1.msra.mxu0 %v1887
        %2031 = vmatprep.subr.mxu0 0.0
        %2032 = vmatpush1.msra.mxu0 %v1882
        %2033 = vmatprep.subr.mxu0 0.0
        %2034 = vmatpush1.msra.mxu0 %v1877
        %2035 = vmatprep.subr.mxu0 0.0
        %2036 = vmatpush2.msra.mxu0 0.0
        %2037 = vmatprep.subr.mxu0 0.0
        %2038 = vmatpush2.msra.mxu0 0.0
        %2039 = vmatprep.subr.mxu0 0.0
        %2040 = vmatpush2.msra.mxu0 0.0
        %2041 = vmatprep.subr.mxu0 0.0
        %2042 = vmatpush2.msra.mxu0 0.0
        %2043 = vmatprep.subr.mxu0 0.0
        %2044 = vmatpush2.msra.mxu0 0.0
        %2045 = vmatprep.subr.mxu0 0.0
        %2046 = vmatpush2.msra.mxu0 0.0
        %2047 = vmatprep.subr.mxu0 0.0
        %2048 = vmatpush2.msra.mxu0 0.0
        %2049 = vmatprep.subr.mxu0 0.0
        %2050 = vmatpush2.msra.mxu0 0.0
        %2051 = vmatprep.subr.mxu0 0.0
        %2052 = vmatpush2.msra.mxu0 0.0
        %2053 = vmatprep.subr.mxu0 0.0
        %2054 = vmatpush2.msra.mxu0 0.0
        %2055 = vmatprep.subr.mxu0 0.0
        %2056 = vmatpush2.msra.mxu0 0.0
        %2057 = vmatprep.subr.mxu0 0.0
        %2058 = vmatpush2.msra.mxu0 0.0
        %2059 = vmatprep.subr.mxu0 0.0
        %2060 = vmatpush2.msra.mxu0 0.0
        %2061 = vmatprep.subr.mxu0 0.0
        %2062 = vmatpush2.msra.mxu0 0.0
        %2063 = vmatprep.subr.mxu0 0.0
        %2064 = vmatpush2.msra.mxu0 0.0
        %2065 = vmatprep.subr.mxu0 0.0
        %2066 = vmatpush2.msra.mxu0 0.0
        %2067 = vmatprep.mubr.f32.mxu0 0.0
        %2068 = vmatmul.mubr.f32.gmra.mxu0 %v2001
        %v2069 = vpop.f32.mrf.mxu0
        %v2070 = vadd.f32 0.0, %v2069
        %v2071 = vpop.f32.mrf.mxu0
        %2072 = vdwg.mxu0
        %2073 = vst.msk [vmem:[%s660] sm:$0xff] %vm711, %v2070
        %p2074 = scmp.eq.s32.totalorder %s39, 1
        // Predicated region
        $region73: #{vq_self_attention.1} parent=67 // pred_check
          %p2075 = pneg %p2074
        $region74: #{vq_self_attention.1} parent=67 // pred_check_branch
          %2077 = sbr.rel (%p2075) target = $region76
        $region75: #{vq_self_attention.1} parent=67 // pred_region
          %v2078 = vld [vmem:[#allocation2] sm:$0x1]
          %2079 = vst.msk [vmem:[%s679] sm:$0x1] %vm1553, %v2078
          %v2080 = vld [vmem:[#allocation3] sm:$0x1]
          %v2081 = vmul.f32 %v2080, 0.0625
          %v2082 = vadd.f32 %v2081, 1e-07
          %v2083 = vlog2.pop %v2082
          %v2084 = vmul.f32 %v2083, 0.6931472
          %v2085 = vmul.f32 %v2081, %v2084
          %v2086 = vsel %vm1564, %v2085, 0.0
          %2087 = vadd.xlane.f32.xlu0 %v2086
          %v2088 = vpop.xlane.xlu0 %2087
          %v2089 = vsub.f32 0.0, %v2088
          %v2090 = vmul.f32 %v2089, 1.442695
          %v2091 = vpow.pop %v2090
          %2092 = vst.msk [vmem:[%s682] sm:$0x1] %vm1553, %v2091
        $region76: #{vq_self_attention.1} parent=67 // pred_fallthru
          _
        %p2093 = scmp.lt.s32.totalorder %s38, 7
        %s2094 = scalar_select %p2093, %s38, 7
        %p2095 = scmp.lt.s32.totalorder %s39, 1
        %s2096 = scalar_select %p2095, %s39, 1
        %s2097 = smul.addr %s2094, 2
        %s2098 = sadd.s32 %s2096, %s2097
        %s2099 = smul.addr %s2098, 8
        %s2100 = scalar_lea.vmem %s12, %s2099
        %p2101 = scmp.lt.s32.totalorder %s38, 7
        %s2102 = scalar_select %p2101, %s38, 7
        %p2103 = scmp.lt.s32.totalorder %s39, 1
        %s2104 = scalar_select %p2103, %s39, 1
        %s2105 = smul.addr %s2102, 2
        %s2106 = sadd.s32 %s2104, %s2105
        %s2107 = smul.addr %s2106, 8
        %s2108 = scalar_lea.vmem %s13, %s2107
        %p2109 = scmp.lt.s32.totalorder %s38, 7
        %s2110 = scalar_select %p2109, %s38, 7
        %p2111 = scmp.lt.s32.totalorder %s39, 1
        %s2112 = scalar_select %p2111, %s39, 1
        %s2113 = smul.addr %s2110, 2
        %s2114 = sadd.s32 %s2112, %s2113
        %s2115 = smul.addr %s2114, 8
        %s2116 = scalar_lea.vmem %s14, %s2115
        %s2117 = sand.u32 %s410, 1
        %s2118 = scalar_lea.sflag [#allocation6], %s2117
        %s2119 = sand.u32 %s410, 1
        %s2120 = smul.addr %s2119, 64
        %s2121 = scalar_lea.vmem [#allocation5], %s2120
        %p2122 = scmp.lt.s32.totalorder %s38, 7
        %s2123 = scalar_select %p2122, %s38, 7
        %s2124 = scalar_lea.vmem %s16, %s2123
        %p2125 = scmp.lt.s32.totalorder %s38, 7
        %s2126 = scalar_select %p2125, %s38, 7
        %s2127 = scalar_lea.vmem %s17, %s2126
        // Predicated region
        $region77: #{vq_self_attention.1} parent=67 // pred_check
          %p2128 = pneg %p338
        $region78: #{vq_self_attention.1} parent=67 // pred_check_branch
          %2130 = sbr.rel (%p2128) target = $region80
        $region79: #{vq_self_attention.1} parent=67 // pred_region
          _
        $region80: #{vq_self_attention.1} parent=67 // pred_fallthru
          _
        // Predicated region
        $region81: #{vq_self_attention.1} parent=67 // pred_check
          %p2131 = pneg %p366
        $region82: #{vq_self_attention.1} parent=67 // pred_check_branch
          %2133 = sbr.rel (%p2131) target = $region84
        $region83: #{vq_self_attention.1} parent=67 // pred_region
          _
        $region84: #{vq_self_attention.1} parent=67 // pred_fallthru
          _
        // Predicated region
        $region85: #{vq_self_attention.1} parent=67 // pred_check
          %p2134 = pneg %p394
        $region86: #{vq_self_attention.1} parent=67 // pred_check_branch
          %2136 = sbr.rel (%p2134) target = $region88
        $region87: #{vq_self_attention.1} parent=67 // pred_region
          _
        $region88: #{vq_self_attention.1} parent=67 // pred_fallthru
          _
        // Predicated region
        $region89: #{vq_self_attention.1} parent=67 // pred_check
          %p2137 = pneg %p420
        $region90: #{vq_self_attention.1} parent=67 // pred_check_branch
          %2139 = sbr.rel (%p2137) target = $region92
        $region91: #{vq_self_attention.1} parent=67 // pred_region
          %s2141 = ssub.s32 1024, 1024
          %2142 = vsyncadd %s2118, %s2141
          %s2143 = smul.addr %s38, 8
          %s2144 = smul.addr %s2143, 128
          %s2145 = scalar_lea.hbm %s15, %s2144
          %s2146 = sshll.u32 %s2121, 4
          %s2147 = int_to_ptr.vmem [resolvable:$true] %s2146
          %2152 = dma.vmem_to_hbm [thread:$0]  %s2147, 1024, %s2145, %s2118, 128, 128, 8
        $region92: #{vq_self_attention.1} parent=67 // pred_fallthru
          _
        // Predicated region
        $region93: #{vq_self_attention.1} parent=67 // pred_check
          %p2153 = pneg %p446
        $region94: #{vq_self_attention.1} parent=67 // pred_check_branch
          %2155 = sbr.rel (%p2153) target = $region96
        $region95: #{vq_self_attention.1} parent=67 // pred_region
          _
        $region96: #{vq_self_attention.1} parent=67 // pred_fallthru
          _
        // Predicated region
        $region97: #{vq_self_attention.1} parent=67 // pred_check
          %p2156 = pneg %p472
        $region98: #{vq_self_attention.1} parent=67 // pred_check_branch
          %2158 = sbr.rel (%p2156) target = $region100
        $region99: #{vq_self_attention.1} parent=67 // pred_region
          _
        $region100: #{vq_self_attention.1} parent=67 // pred_fallthru
          _
      $region68: #{vq_self_attention.1} parent=5 // pred_fallthru
        _
      %p2159 = scmp.le.s32.totalorder 2, %s29
      // Predicated region
      $region101: #{vq_self_attention.1} parent=5 // pred_check
        %p2160 = pneg %p2159
      $region102: #{vq_self_attention.1} parent=5 // pred_check_branch
        %2162 = sbr.rel (%p2160) target = $region104
      $region103: #{vq_self_attention.1} parent=5 // pred_region
        %s2163 = ssub.s32 %s29, 2
        // Predicated region
        $region105: #{vq_self_attention.1} parent=103 // pred_check
          %p2164 = pneg %p344
        $region106: #{vq_self_attention.1} parent=103 // pred_check_branch
          %2166 = sbr.rel (%p2164) target = $region108
        $region107: #{vq_self_attention.1} parent=103 // pred_region
          %p2167 = scmp.lt.s32.totalorder %s40, 7
          %s2168 = scalar_select %p2167, %s40, 7
          %p2169 = scmp.lt.s32.totalorder %s41, 1
          %s2170 = scalar_select %p2169, %s41, 1
          %s2171 = smul.addr %s2168, 2
          %s2172 = sadd.s32 %s2170, %s2171
          %s2173 = smul.addr %s2172, 8
          %s2174 = scalar_lea.vmem %s12, %s2173
        $region108: #{vq_self_attention.1} parent=103 // pred_fallthru
          _
        // Predicated region
        $region109: #{vq_self_attention.1} parent=103 // pred_check
          %p2175 = pneg %p372
        $region110: #{vq_self_attention.1} parent=103 // pred_check_branch
          %2177 = sbr.rel (%p2175) target = $region112
        $region111: #{vq_self_attention.1} parent=103 // pred_region
          %p2178 = scmp.lt.s32.totalorder %s40, 7
          %s2179 = scalar_select %p2178, %s40, 7
          %p2180 = scmp.lt.s32.totalorder %s41, 1
          %s2181 = scalar_select %p2180, %s41, 1
          %s2182 = smul.addr %s2179, 2
          %s2183 = sadd.s32 %s2181, %s2182
          %s2184 = smul.addr %s2183, 8
          %s2185 = scalar_lea.vmem %s13, %s2184
        $region112: #{vq_self_attention.1} parent=103 // pred_fallthru
          _
        // Predicated region
        $region113: #{vq_self_attention.1} parent=103 // pred_check
          %p2186 = pneg %p400
        $region114: #{vq_self_attention.1} parent=103 // pred_check_branch
          %2188 = sbr.rel (%p2186) target = $region116
        $region115: #{vq_self_attention.1} parent=103 // pred_region
          %p2189 = scmp.lt.s32.totalorder %s40, 7
          %s2190 = scalar_select %p2189, %s40, 7
          %p2191 = scmp.lt.s32.totalorder %s41, 1
          %s2192 = scalar_select %p2191, %s41, 1
          %s2193 = smul.addr %s2190, 2
          %s2194 = sadd.s32 %s2192, %s2193
          %s2195 = smul.addr %s2194, 8
          %s2196 = scalar_lea.vmem %s14, %s2195
        $region116: #{vq_self_attention.1} parent=103 // pred_fallthru
          _
        // Predicated region
        $region117: #{vq_self_attention.1} parent=103 // pred_check
          %p2197 = pneg %p426
        $region118: #{vq_self_attention.1} parent=103 // pred_check_branch
          %2199 = sbr.rel (%p2197) target = $region120
        $region119: #{vq_self_attention.1} parent=103 // pred_region
          %s2200 = sand.u32 %s411, 1
          %s2201 = scalar_lea.sflag [#allocation6], %s2200
          %s2202 = sand.u32 %s411, 1
          %s2203 = smul.addr %s2202, 64
          %s2204 = scalar_lea.vmem [#allocation5], %s2203
          %2205 = dma.done %s2201, 1024
        $region120: #{vq_self_attention.1} parent=103 // pred_fallthru
          _
        // Predicated region
        $region121: #{vq_self_attention.1} parent=103 // pred_check
          %p2206 = pneg %p452
        $region122: #{vq_self_attention.1} parent=103 // pred_check_branch
          %2208 = sbr.rel (%p2206) target = $region124
        $region123: #{vq_self_attention.1} parent=103 // pred_region
          %p2209 = scmp.lt.s32.totalorder %s40, 7
          %s2210 = scalar_select %p2209, %s40, 7
          %s2211 = scalar_lea.vmem %s16, %s2210
        $region124: #{vq_self_attention.1} parent=103 // pred_fallthru
          _
        // Predicated region
        $region125: #{vq_self_attention.1} parent=103 // pred_check
          %p2212 = pneg %p478
        $region126: #{vq_self_attention.1} parent=103 // pred_check_branch
          %2214 = sbr.rel (%p2212) target = $region128
        $region127: #{vq_self_attention.1} parent=103 // pred_region
          %p2215 = scmp.lt.s32.totalorder %s40, 7
          %s2216 = scalar_select %p2215, %s40, 7
          %s2217 = scalar_lea.vmem %s17, %s2216
        $region128: #{vq_self_attention.1} parent=103 // pred_fallthru
          _
      $region104: #{vq_self_attention.1} parent=5 // pred_fallthru
        _
    $region6: #{vq_self_attention.1} parent=1 // loop_footer
      %s33 = sadd.s32 1, %s29
    $region7: #{vq_self_attention.1} parent=1 // loop_footer_branch
      %28 = sbr.rel target = $region3
    $region8: #{vq_self_attention.1} parent=1 // loop_exit
      _
    %2218 = vsyncpa [#allocation6], 1
    %s2219 = scalar_lea.sflag [#allocation6], 1
    %2220 = vsyncpa %s2219, 1

</llo_original>
